<compile_context>
chip_gen: v7x
topology: tpu7x:2x2x1
jax: 0.10.0
libtpu: 0.0.40
codegen_flags: <defaults>
</compile_context>

<pallas_src>
import functools

import jax
import jax.numpy as jnp
from jax import lax
from jax.experimental import pallas as pl
from jax.experimental.pallas import tpu as pltpu

_BN_EPS = 1e-5


# ----------------------------------------------------------------------------
# Pallas kernel: K*K-tap conv (shifted matmuls) + folded BN + ReLU, one image
# per grid step (grid over batch, megacore-parallel).
# ----------------------------------------------------------------------------
def _conv_bn_relu_kernel(x_ref, w_ref, scale_ref, bias_ref, o_ref, *, K, H_out, W_out):
    Cin = x_ref.shape[-1]
    Cout = o_ref.shape[-1]
    acc = jnp.zeros((H_out * W_out, Cout), jnp.float32)
    # Unrolled tap loop: each tap is a lane-contraction matmul on the MXU.
    for kh in range(K):
        for kw in range(K):
            patch = x_ref[0, kh:kh + H_out, kw:kw + W_out, :]       # (H_out, W_out, Cin)
            patch2 = patch.reshape(H_out * W_out, Cin)              # collapse to 2D for MXU
            acc = acc + jnp.dot(
                patch2, w_ref[kh * K + kw],
                preferred_element_type=jnp.float32)
    y = acc * scale_ref[...] + bias_ref[...]                        # folded BatchNorm
    y = jnp.maximum(y, 0.0)                                         # ReLU
    o_ref[...] = y.reshape(1, H_out, W_out, Cout).astype(o_ref.dtype)


def _conv_bn_relu(x_pad, w_taps, scale, bias, H_out, W_out, K):
    """x_pad: (N, H_pad, W_pad, Cin) already spatially padded (and zero-dilated
    for the deconv path). w_taps: (K*K, Cin, Cout). scale/bias: (1, Cout)."""
    N, H_pad, W_pad, Cin = x_pad.shape
    Cout = w_taps.shape[-1]
    kernel = functools.partial(_conv_bn_relu_kernel, K=K, H_out=H_out, W_out=W_out)
    # TODO(synk): for production-size feature maps (e.g. 512ch x 128x128), tile
    # the H axis with a (K-1)-row halo instead of one whole image per grid step.
    return pl.pallas_call(
        kernel,
        out_shape=jax.ShapeDtypeStruct((N, H_out, W_out, Cout), x_pad.dtype),
        grid_spec=pltpu.PrefetchScalarGridSpec(
            num_scalar_prefetch=0,
            grid=(N,),
            in_specs=[
                pl.BlockSpec((1, H_pad, W_pad, Cin), lambda n: (n, 0, 0, 0)),
                pl.BlockSpec((K * K, Cin, Cout), lambda n: (0, 0, 0)),
                pl.BlockSpec((1, Cout), lambda n: (0, 0)),
                pl.BlockSpec((1, Cout), lambda n: (0, 0)),
            ],
            out_specs=pl.BlockSpec((1, H_out, W_out, Cout), lambda n: (n, 0, 0, 0)),
        ),
        compiler_params=pltpu.CompilerParams(
            dimension_semantics=("parallel",),   # batch axis can shard across TCs (v7x)
        ),
    )(x_pad, w_taps, scale, bias)


# ----------------------------------------------------------------------------
# CTResNetNeck forward (inference-mode BN folded into per-channel scale/bias).
# ----------------------------------------------------------------------------
def _fold_bn(gamma, beta, mean, var):
    scale = gamma / jnp.sqrt(var + _BN_EPS)
    bias = beta - mean * scale
    return (scale.reshape(1, -1).astype(jnp.float32),
            bias.reshape(1, -1).astype(jnp.float32))


def ct_resnet_neck_forward(x_nchw, params, num_deconv_kernels):
    x = jnp.transpose(x_nchw, (0, 2, 3, 1))  # -> NHWC (channels on lanes)
    for stage, K in zip(params, num_deconv_kernels):
        assert K >= 3, "deconv kernel sizes < 3 not supported (CenterNet uses 4)"

        # --- ConvModule #1: Conv2d(3x3, pad=1, bias=False) + BN + ReLU ------
        N, H, W, Cin = x.shape
        w = stage["conv_w"]                                   # (Cout, Cin, 3, 3) torch layout
        Cout = w.shape[0]
        w_taps = jnp.transpose(w, (2, 3, 1, 0)).reshape(9, Cin, Cout)
        scale, bias = _fold_bn(*stage["conv_bn"])
        x_pad = jnp.pad(x, ((0, 0), (1, 1), (1, 1), (0, 0)))
        x = _conv_bn_relu(x_pad, w_taps, scale, bias, H, W, 3)

        # --- ConvModule #2: ConvTranspose2d(K, stride=2, pad=1, bias=False)
        #     + BN + ReLU.  Equivalent to: zero-dilate by 2, pad (K-2, K-3),
        #     then regular conv with the spatially flipped kernel.
        N, H, W, C = x.shape
        wd = stage["deconv_w"]                                # (Cin, Cout, K, K) torch layout
        Cd = wd.shape[1]
        wd_taps = jnp.transpose(jnp.flip(wd, (2, 3)), (2, 3, 0, 1)).reshape(K * K, C, Cd)
        scale2, bias2 = _fold_bn(*stage["deconv_bn"])
        H_out, W_out = 2 * H + K - 4, 2 * W + K - 4           # torch output size
        x_up = jnp.zeros((N, 2 * H, 2 * W, C), x.dtype).at[:, ::2, ::2, :].set(x)
        x_up = jnp.pad(x_up, ((0, 0), (K - 2, K - 3), (K - 2, K - 3), (0, 0)))
        x = _conv_bn_relu(x_up, wd_taps, scale2, bias2, H_out, W_out, K)
    return jnp.transpose(x, (0, 3, 1, 2))  # back to NCHW


# ----------------------------------------------------------------------------
# Parameter init (PyTorch-layout weights) and a pure-XLA reference for checking.
# ----------------------------------------------------------------------------
def init_params(key, in_channel, num_deconv_filters, num_deconv_kernels):
    params = []
    c_in = in_channel
    for c_out, k in zip(num_deconv_filters, num_deconv_kernels):
        key, *ks = jax.random.split(key, 11)
        conv_w = 0.1 * jax.random.normal(ks[0], (c_out, c_in, 3, 3), jnp.float32)
        conv_bn = (1.0 + 0.1 * jax.random.normal(ks[1], (c_out,), jnp.float32),
                   0.1 * jax.random.normal(ks[2], (c_out,), jnp.float32),
                   0.1 * jax.random.normal(ks[3], (c_out,), jnp.float32),
                   jax.random.uniform(ks[4], (c_out,), jnp.float32, 0.5, 1.5))
        deconv_w = 0.1 * jax.random.normal(ks[5], (c_out, c_out, k, k), jnp.float32)
        deconv_bn = (1.0 + 0.1 * jax.random.normal(ks[6], (c_out,), jnp.float32),
                     0.1 * jax.random.normal(ks[7], (c_out,), jnp.float32),
                     0.1 * jax.random.normal(ks[8], (c_out,), jnp.float32),
                     jax.random.uniform(ks[9], (c_out,), jnp.float32, 0.5, 1.5))
        params.append({"conv_w": conv_w, "conv_bn": conv_bn,
                       "deconv_w": deconv_w, "deconv_bn": deconv_bn})
        c_in = c_out
    return params


def reference_forward(x_nchw, params, num_deconv_kernels):
    dn = ("NHWC", "HWIO", "NHWC")
    x = jnp.transpose(x_nchw, (0, 2, 3, 1))
    for stage, K in zip(params, num_deconv_kernels):
        w = jnp.transpose(stage["conv_w"], (2, 3, 1, 0))
        y = lax.conv_general_dilated(x, w, (1, 1), ((1, 1), (1, 1)), dimension_numbers=dn)
        s, b = _fold_bn(*stage["conv_bn"])
        x = jnp.maximum(y * s.reshape(1, 1, 1, -1) + b.reshape(1, 1, 1, -1), 0.0)

        wd = jnp.transpose(jnp.flip(stage["deconv_w"], (2, 3)), (2, 3, 0, 1))
        y = lax.conv_general_dilated(x, wd, (1, 1), ((K - 2, K - 2), (K - 2, K - 2)),
                                     lhs_dilation=(2, 2), dimension_numbers=dn)
        s, b = _fold_bn(*stage["deconv_bn"])
        x = jnp.maximum(y * s.reshape(1, 1, 1, -1) + b.reshape(1, 1, 1, -1), 0.0)
    return jnp.transpose(x, (0, 3, 1, 2))


if __name__ == "__main__":
    key = jax.random.PRNGKey(0)
    in_channel = 16
    num_deconv_filters = (16, 8)
    num_deconv_kernels = (4, 4)

    k_x, k_p = jax.random.split(key)
    x = jax.random.normal(k_x, (2, in_channel, 8, 8), jnp.float32)   # NCHW backbone feature
    params = init_params(k_p, in_channel, num_deconv_filters, num_deconv_kernels)

    out = ct_resnet_neck_forward(x, params, num_deconv_kernels)
    jax.block_until_ready(out)

    ref = reference_forward(x, params, num_deconv_kernels)
    assert out.shape == (2, num_deconv_filters[-1], 32, 32), out.shape
    assert out.dtype == x.dtype
    max_err = float(jnp.max(jnp.abs(out - ref)))
    assert jnp.allclose(out, ref, rtol=2e-2, atol=2e-2), f"max_abs_err={max_err}"
    print("KERNEL_OK")
</pallas_src>

<mosaic_0001>
module attributes {stable_mosaic.version = 11 : i64} {
  func.func @_conv_bn_relu_kernel(%arg0: i32, %arg1: memref<1x10x10x16xf32, #tpu.memory_space<vmem>>, %arg2: memref<9x16x16xf32, #tpu.memory_space<vmem>>, %arg3: memref<1x16xf32, #tpu.memory_space<vmem>>, %arg4: memref<1x16xf32, #tpu.memory_space<vmem>>, %arg5: memref<1x8x8x16xf32, #tpu.memory_space<vmem>>) attributes {dimension_semantics = [#tpu.dimension_semantics<parallel>], iteration_bounds = array<i64: 2>, scalar_prefetch = 0 : i64, scratch_operands = 0 : i64, tpu.core_type = #tpu.core_type<tc>, window_params = [{transform_indices = @transform_0, window_bounds = array<i64: 1, 10, 10, 16>}, {pipeline_mode = #tpu.pipeline_mode<synchronous>, transform_indices = @transform_1, window_bounds = array<i64: 9, 16, 16>}, {pipeline_mode = #tpu.pipeline_mode<synchronous>, transform_indices = @transform_2, window_bounds = array<i64: 1, 16>}, {pipeline_mode = #tpu.pipeline_mode<synchronous>, transform_indices = @transform_3, window_bounds = array<i64: 1, 16>}, {transform_indices = @transform_4, window_bounds = array<i64: 1, 8, 8, 16>}]} {
    %cst = arith.constant 0.000000e+00 : f32
    %0 = vector.broadcast %cst : f32 to vector<64x16xf32>
    %c0 = arith.constant 0 : index
    %c0_0 = arith.constant 0 : index
    %c0_1 = arith.constant 0 : index
    %c0_2 = arith.constant 0 : index
    %1 = vector.load %arg1[%c0, %c0_0, %c0_1, %c0_2] : memref<1x10x10x16xf32, #tpu.memory_space<vmem>>, vector<1x8x8x16xf32>
    %2 = vector.shape_cast %1 : vector<1x8x8x16xf32> to vector<8x8x16xf32>
    %3 = vector.shape_cast %2 : vector<8x8x16xf32> to vector<64x16xf32>
    %c0_3 = arith.constant 0 : index
    %c0_4 = arith.constant 0 : index
    %c0_5 = arith.constant 0 : index
    %4 = vector.load %arg2[%c0_3, %c0_4, %c0_5] : memref<9x16x16xf32, #tpu.memory_space<vmem>>, vector<1x16x16xf32>
    %5 = vector.shape_cast %4 : vector<1x16x16xf32> to vector<16x16xf32>
    %cst_6 = arith.constant dense<0.000000e+00> : vector<64x16xf32>
    %6 = tpu.matmul %3, %5, %cst_6 {dimension_numbers = #tpu.dot_dimension_numbers<[1], [0], [0], [1], [0, 0, 1, 1], [], []>} : vector<64x16xf32>, vector<16x16xf32>, vector<64x16xf32> -> vector<64x16xf32>
    %7 = arith.addf %0, %6 : vector<64x16xf32>
    %c0_7 = arith.constant 0 : index
    %c0_8 = arith.constant 0 : index
    %c1 = arith.constant 1 : index
    %c0_9 = arith.constant 0 : index
    %8 = vector.load %arg1[%c0_7, %c0_8, %c1, %c0_9] : memref<1x10x10x16xf32, #tpu.memory_space<vmem>>, vector<1x8x8x16xf32>
    %9 = vector.shape_cast %8 : vector<1x8x8x16xf32> to vector<8x8x16xf32>
    %10 = vector.shape_cast %9 : vector<8x8x16xf32> to vector<64x16xf32>
    %c1_10 = arith.constant 1 : index
    %c0_11 = arith.constant 0 : index
    %c0_12 = arith.constant 0 : index
    %11 = vector.load %arg2[%c1_10, %c0_11, %c0_12] : memref<9x16x16xf32, #tpu.memory_space<vmem>>, vector<1x16x16xf32>
    %12 = vector.shape_cast %11 : vector<1x16x16xf32> to vector<16x16xf32>
    %cst_13 = arith.constant dense<0.000000e+00> : vector<64x16xf32>
    %13 = tpu.matmul %10, %12, %cst_13 {dimension_numbers = #tpu.dot_dimension_numbers<[1], [0], [0], [1], [0, 0, 1, 1], [], []>} : vector<64x16xf32>, vector<16x16xf32>, vector<64x16xf32> -> vector<64x16xf32>
    %14 = arith.addf %7, %13 : vector<64x16xf32>
    %c0_14 = arith.constant 0 : index
    %c0_15 = arith.constant 0 : index
    %c2 = arith.constant 2 : index
    %c0_16 = arith.constant 0 : index
    %15 = vector.load %arg1[%c0_14, %c0_15, %c2, %c0_16] : memref<1x10x10x16xf32, #tpu.memory_space<vmem>>, vector<1x8x8x16xf32>
    %16 = vector.shape_cast %15 : vector<1x8x8x16xf32> to vector<8x8x16xf32>
    %17 = vector.shape_cast %16 : vector<8x8x16xf32> to vector<64x16xf32>
    %c2_17 = arith.constant 2 : index
    %c0_18 = arith.constant 0 : index
    %c0_19 = arith.constant 0 : index
    %18 = vector.load %arg2[%c2_17, %c0_18, %c0_19] : memref<9x16x16xf32, #tpu.memory_space<vmem>>, vector<1x16x16xf32>
    %19 = vector.shape_cast %18 : vector<1x16x16xf32> to vector<16x16xf32>
    %cst_20 = arith.constant dense<0.000000e+00> : vector<64x16xf32>
    %20 = tpu.matmul %17, %19, %cst_20 {dimension_numbers = #tpu.dot_dimension_numbers<[1], [0], [0], [1], [0, 0, 1, 1], [], []>} : vector<64x16xf32>, vector<16x16xf32>, vector<64x16xf32> -> vector<64x16xf32>
    %21 = arith.addf %14, %20 : vector<64x16xf32>
    %c0_21 = arith.constant 0 : index
    %c1_22 = arith.constant 1 : index
    %c0_23 = arith.constant 0 : index
    %c0_24 = arith.constant 0 : index
    %22 = vector.load %arg1[%c0_21, %c1_22, %c0_23, %c0_24] : memref<1x10x10x16xf32, #tpu.memory_space<vmem>>, vector<1x8x8x16xf32>
    %23 = vector.shape_cast %22 : vector<1x8x8x16xf32> to vector<8x8x16xf32>
    %24 = vector.shape_cast %23 : vector<8x8x16xf32> to vector<64x16xf32>
    %c3 = arith.constant 3 : index
    %c0_25 = arith.constant 0 : index
    %c0_26 = arith.constant 0 : index
    %25 = vector.load %arg2[%c3, %c0_25, %c0_26] : memref<9x16x16xf32, #tpu.memory_space<vmem>>, vector<1x16x16xf32>
    %26 = vector.shape_cast %25 : vector<1x16x16xf32> to vector<16x16xf32>
    %cst_27 = arith.constant dense<0.000000e+00> : vector<64x16xf32>
    %27 = tpu.matmul %24, %26, %cst_27 {dimension_numbers = #tpu.dot_dimension_numbers<[1], [0], [0], [1], [0, 0, 1, 1], [], []>} : vector<64x16xf32>, vector<16x16xf32>, vector<64x16xf32> -> vector<64x16xf32>
    %28 = arith.addf %21, %27 : vector<64x16xf32>
    %c0_28 = arith.constant 0 : index
    %c1_29 = arith.constant 1 : index
    %c1_30 = arith.constant 1 : index
    %c0_31 = arith.constant 0 : index
    %29 = vector.load %arg1[%c0_28, %c1_29, %c1_30, %c0_31] : memref<1x10x10x16xf32, #tpu.memory_space<vmem>>, vector<1x8x8x16xf32>
    %30 = vector.shape_cast %29 : vector<1x8x8x16xf32> to vector<8x8x16xf32>
    %31 = vector.shape_cast %30 : vector<8x8x16xf32> to vector<64x16xf32>
    %c4 = arith.constant 4 : index
    %c0_32 = arith.constant 0 : index
    %c0_33 = arith.constant 0 : index
    %32 = vector.load %arg2[%c4, %c0_32, %c0_33] : memref<9x16x16xf32, #tpu.memory_space<vmem>>, vector<1x16x16xf32>
    %33 = vector.shape_cast %32 : vector<1x16x16xf32> to vector<16x16xf32>
    %cst_34 = arith.constant dense<0.000000e+00> : vector<64x16xf32>
    %34 = tpu.matmul %31, %33, %cst_34 {dimension_numbers = #tpu.dot_dimension_numbers<[1], [0], [0], [1], [0, 0, 1, 1], [], []>} : vector<64x16xf32>, vector<16x16xf32>, vector<64x16xf32> -> vector<64x16xf32>
    %35 = arith.addf %28, %34 : vector<64x16xf32>
    %c0_35 = arith.constant 0 : index
    %c1_36 = arith.constant 1 : index
    %c2_37 = arith.constant 2 : index
    %c0_38 = arith.constant 0 : index
    %36 = vector.load %arg1[%c0_35, %c1_36, %c2_37, %c0_38] : memref<1x10x10x16xf32, #tpu.memory_space<vmem>>, vector<1x8x8x16xf32>
    %37 = vector.shape_cast %36 : vector<1x8x8x16xf32> to vector<8x8x16xf32>
    %38 = vector.shape_cast %37 : vector<8x8x16xf32> to vector<64x16xf32>
    %c5 = arith.constant 5 : index
    %c0_39 = arith.constant 0 : index
    %c0_40 = arith.constant 0 : index
    %39 = vector.load %arg2[%c5, %c0_39, %c0_40] : memref<9x16x16xf32, #tpu.memory_space<vmem>>, vector<1x16x16xf32>
    %40 = vector.shape_cast %39 : vector<1x16x16xf32> to vector<16x16xf32>
    %cst_41 = arith.constant dense<0.000000e+00> : vector<64x16xf32>
    %41 = tpu.matmul %38, %40, %cst_41 {dimension_numbers = #tpu.dot_dimension_numbers<[1], [0], [0], [1], [0, 0, 1, 1], [], []>} : vector<64x16xf32>, vector<16x16xf32>, vector<64x16xf32> -> vector<64x16xf32>
    %42 = arith.addf %35, %41 : vector<64x16xf32>
    %c0_42 = arith.constant 0 : index
    %c2_43 = arith.constant 2 : index
    %c0_44 = arith.constant 0 : index
    %c0_45 = arith.constant 0 : index
    %43 = vector.load %arg1[%c0_42, %c2_43, %c0_44, %c0_45] : memref<1x10x10x16xf32, #tpu.memory_space<vmem>>, vector<1x8x8x16xf32>
    %44 = vector.shape_cast %43 : vector<1x8x8x16xf32> to vector<8x8x16xf32>
    %45 = vector.shape_cast %44 : vector<8x8x16xf32> to vector<64x16xf32>
    %c6 = arith.constant 6 : index
    %c0_46 = arith.constant 0 : index
    %c0_47 = arith.constant 0 : index
    %46 = vector.load %arg2[%c6, %c0_46, %c0_47] : memref<9x16x16xf32, #tpu.memory_space<vmem>>, vector<1x16x16xf32>
    %47 = vector.shape_cast %46 : vector<1x16x16xf32> to vector<16x16xf32>
    %cst_48 = arith.constant dense<0.000000e+00> : vector<64x16xf32>
    %48 = tpu.matmul %45, %47, %cst_48 {dimension_numbers = #tpu.dot_dimension_numbers<[1], [0], [0], [1], [0, 0, 1, 1], [], []>} : vector<64x16xf32>, vector<16x16xf32>, vector<64x16xf32> -> vector<64x16xf32>
    %49 = arith.addf %42, %48 : vector<64x16xf32>
    %c0_49 = arith.constant 0 : index
    %c2_50 = arith.constant 2 : index
    %c1_51 = arith.constant 1 : index
    %c0_52 = arith.constant 0 : index
    %50 = vector.load %arg1[%c0_49, %c2_50, %c1_51, %c0_52] : memref<1x10x10x16xf32, #tpu.memory_space<vmem>>, vector<1x8x8x16xf32>
    %51 = vector.shape_cast %50 : vector<1x8x8x16xf32> to vector<8x8x16xf32>
    %52 = vector.shape_cast %51 : vector<8x8x16xf32> to vector<64x16xf32>
    %c7 = arith.constant 7 : index
    %c0_53 = arith.constant 0 : index
    %c0_54 = arith.constant 0 : index
    %53 = vector.load %arg2[%c7, %c0_53, %c0_54] : memref<9x16x16xf32, #tpu.memory_space<vmem>>, vector<1x16x16xf32>
    %54 = vector.shape_cast %53 : vector<1x16x16xf32> to vector<16x16xf32>
    %cst_55 = arith.constant dense<0.000000e+00> : vector<64x16xf32>
    %55 = tpu.matmul %52, %54, %cst_55 {dimension_numbers = #tpu.dot_dimension_numbers<[1], [0], [0], [1], [0, 0, 1, 1], [], []>} : vector<64x16xf32>, vector<16x16xf32>, vector<64x16xf32> -> vector<64x16xf32>
    %56 = arith.addf %49, %55 : vector<64x16xf32>
    %c0_56 = arith.constant 0 : index
    %c2_57 = arith.constant 2 : index
    %c2_58 = arith.constant 2 : index
    %c0_59 = arith.constant 0 : index
    %57 = vector.load %arg1[%c0_56, %c2_57, %c2_58, %c0_59] : memref<1x10x10x16xf32, #tpu.memory_space<vmem>>, vector<1x8x8x16xf32>
    %58 = vector.shape_cast %57 : vector<1x8x8x16xf32> to vector<8x8x16xf32>
    %59 = vector.shape_cast %58 : vector<8x8x16xf32> to vector<64x16xf32>
    %c8 = arith.constant 8 : index
    %c0_60 = arith.constant 0 : index
    %c0_61 = arith.constant 0 : index
    %60 = vector.load %arg2[%c8, %c0_60, %c0_61] : memref<9x16x16xf32, #tpu.memory_space<vmem>>, vector<1x16x16xf32>
    %61 = vector.shape_cast %60 : vector<1x16x16xf32> to vector<16x16xf32>
    %cst_62 = arith.constant dense<0.000000e+00> : vector<64x16xf32>
    %62 = tpu.matmul %59, %61, %cst_62 {dimension_numbers = #tpu.dot_dimension_numbers<[1], [0], [0], [1], [0, 0, 1, 1], [], []>} : vector<64x16xf32>, vector<16x16xf32>, vector<64x16xf32> -> vector<64x16xf32>
    %63 = arith.addf %56, %62 : vector<64x16xf32>
    %c0_63 = arith.constant 0 : index
    %c0_64 = arith.constant 0 : index
    %64 = vector.load %arg3[%c0_63, %c0_64] : memref<1x16xf32, #tpu.memory_space<vmem>>, vector<1x16xf32>
    %65 = vector.broadcast %64 : vector<1x16xf32> to vector<64x16xf32>
    %66 = arith.mulf %63, %65 : vector<64x16xf32>
    %c0_65 = arith.constant 0 : index
    %c0_66 = arith.constant 0 : index
    %67 = vector.load %arg4[%c0_65, %c0_66] : memref<1x16xf32, #tpu.memory_space<vmem>>, vector<1x16xf32>
    %68 = vector.broadcast %67 : vector<1x16xf32> to vector<64x16xf32>
    %69 = arith.addf %66, %68 : vector<64x16xf32>
    %cst_67 = arith.constant 0.000000e+00 : f32
    %70 = vector.broadcast %cst_67 : f32 to vector<64x16xf32>
    %71 = arith.maximumf %69, %70 : vector<64x16xf32>
    %72 = vector.shape_cast %71 : vector<64x16xf32> to vector<1x8x8x16xf32>
    %c0_68 = arith.constant 0 : index
    %c0_69 = arith.constant 0 : index
    %c0_70 = arith.constant 0 : index
    %c0_71 = arith.constant 0 : index
    %73 = vector.load %arg5[%c0_68, %c0_69, %c0_70, %c0_71] : memref<1x8x8x16xf32, #tpu.memory_space<vmem>>, vector<1x8x8x16xf32>
    tpu.vector_store %arg5[%c0_68, %c0_69, %c0_70, %c0_71], %72 {strides = array<i32>} : memref<1x8x8x16xf32, #tpu.memory_space<vmem>>, vector<1x8x8x16xf32>,
    return
  }
  func.func @transform_0(%arg0: i32) -> (i32, i32, i32, i32) {
    %c0_i32 = arith.constant 0 : i32
    %c0_i32_0 = arith.constant 0 : i32
    %c0_i32_1 = arith.constant 0 : i32
    %c0_i32_2 = arith.constant 0 : i32
    return %arg0, %c0_i32, %c0_i32_0, %c0_i32_1 : i32, i32, i32, i32
  }
  func.func @transform_1(%arg0: i32) -> (i32, i32, i32) {
    %c0_i32 = arith.constant 0 : i32
    %c0_i32_0 = arith.constant 0 : i32
    %c0_i32_1 = arith.constant 0 : i32
    %c0_i32_2 = arith.constant 0 : i32
    return %c0_i32, %c0_i32_0, %c0_i32_1 : i32, i32, i32
  }
  func.func @transform_2(%arg0: i32) -> (i32, i32) {
    %c0_i32 = arith.constant 0 : i32
    %c0_i32_0 = arith.constant 0 : i32
    %c0_i32_1 = arith.constant 0 : i32
    return %c0_i32, %c0_i32_0 : i32, i32
  }
  func.func @transform_3(%arg0: i32) -> (i32, i32) {
    %c0_i32 = arith.constant 0 : i32
    %c0_i32_0 = arith.constant 0 : i32
    %c0_i32_1 = arith.constant 0 : i32
    return %c0_i32, %c0_i32_0 : i32, i32
  }
  func.func @transform_4(%arg0: i32) -> (i32, i32, i32, i32) {
    %c0_i32 = arith.constant 0 : i32
    %c0_i32_0 = arith.constant 0 : i32
    %c0_i32_1 = arith.constant 0 : i32
    %c0_i32_2 = arith.constant 0 : i32
    return %arg0, %c0_i32, %c0_i32_0, %c0_i32_1 : i32, i32, i32, i32
  }
}

</mosaic_0001>

<llo_original>
// kernel: tpu_custom_call.1
$region0: #{tpu_custom_call.1}
  #allocation0 [shape = 'u32[]', space=smem, size = 0x4, offset = 0x4, fixed_abs, tag = 'smem constant byte address 0x4 - core index']
  #allocation1 [shape = 'u32[144,128]{1,0:T(1,128)}', space=vmem, size = 0x12000, scoped, tag = 'internal scratch']
  %s0 = inlined_call_operand.vmem [shape: f32[2,10,10,16], index: 0, kind: input, shape index: {}]
  %s1 = inlined_call_operand.vmem [shape: f32[9,16,16], index: 1, kind: input, shape index: {}]
  %s2 = inlined_call_operand.vmem [shape: f32[1,16], index: 2, kind: input, shape index: {}]
  %s3 = inlined_call_operand.vmem [shape: f32[1,16], index: 3, kind: input, shape index: {}]
  %s4 = inlined_call_operand.hbm [shape: f32[2,8,8,16], index: 4, kind: output, shape index: {}]
  %s5 = sld [smem:[#allocation0]]
  $region49: #{tpu_custom_call.1} parent=0
    _
  %s7 = ssub.s32 1, %s5
  %s8 = scalar_select 0, %s7, %s5
  $region1: #{tpu_custom_call.1} parent=0
    #allocation2 [shape = 'u8[65536]{0}', space=vmem, size = 0x10000, scoped, tag = 'output window, operand 0']
    #allocation3 [shape = 's32[2]{0}', space=sflag, size = 0x8, scoped, tag = 'scoped memory for tpu_custom_call.1']
    %9 = vsyncpa [#allocation3], 0
    %s10 = scalar_lea.sflag [#allocation3], 1
    %11 = vsyncpa %s10, 0
    loop: start=0, step=1, limit=4
    $region2: #{tpu_custom_call.1} parent=1 // loop_pre_header
      _
    $region3: #{tpu_custom_call.1} parent=1 // loop_header
      %s13 = sphi 0, %s17
      %p14 = scmp.ge.s32.totalorder %s13, 4
      %s23 = sphi 0, %s25
      %s26 = sphi 0, %s23
      %s27 = sphi 0, %s26
      %s43 = sphi 0, %s27
      %s47 = sphi 0, %s47
      %s49 = sphi 0, %s47
      %s50 = sphi 0, %s49
      %s64 = sphi 0, %s50
      %s68 = sphi 0, %s68
      %s70 = sphi 0, %s68
      %s71 = sphi 0, %s70
      %s85 = sphi 0, %s71
      %s89 = sphi 0, %s89
      %s91 = sphi 0, %s89
      %s92 = sphi 0, %s91
      %s106 = sphi 0, %s92
      %s112 = sphi 0, %s114
      %s115 = sphi 0, %s112
      %s116 = sphi 0, %s115
      %s132 = sphi 0, %s116
    $region4: #{tpu_custom_call.1} parent=1 // loop_header_branch
      %16 = sbr.rel (%p14) target = $region8
    $region5: #{tpu_custom_call.1} parent=1 // loop_body
      %s18 = ssub.s32 %s13, 1
      %s19 = ssub.s32 %s13, 2
      %s20 = sadd.s32 %s13, 1
      %s21 = ssub.s32 %s13, %s20
      %p22 = scmp.eq.s32.totalorder %s21, 0
      %s24 = sadd.s32 %s23, 1
      %s25 = scalar_select %p22, %s23, %s24
      %p28 = pneg %p22
      %p29 = scmp.eq.s32.totalorder %s13, 1
      %p30 = por %p28, %p29
      %p31 = scmp.ne.s32.totalorder %s23, %s26
      %p32 = scmp.eq.s32.totalorder %s13, 0
      %p33 = por %p31, %p32
      %p34 = scmp.ne.s32.totalorder %s23, %s26
      %p35 = scmp.eq.s32.totalorder %s18, 1
      %p36 = por %p34, %p35
      %p37 = scmp.ne.s32.totalorder %s26, %s27
      %p38 = scmp.eq.s32.totalorder %s18, 0
      %p39 = por %p37, %p38
      %p40 = scmp.ne.s32.totalorder %s26, %s27
      %p41 = scmp.eq.s32.totalorder %s19, 1
      %p42 = por %p40, %p41
      %p44 = scmp.ne.s32.totalorder %s27, %s43
      %p45 = scmp.eq.s32.totalorder %s19, 0
      %p46 = por %p44, %p45
      %s48 = sadd.s32 %s47, 1
      %p51 = scmp.eq.s32.totalorder %s13, 1
      %p52 = scmp.ne.s32.totalorder %s47, %s49
      %p53 = scmp.eq.s32.totalorder %s13, 0
      %p54 = por %p52, %p53
      %p55 = scmp.ne.s32.totalorder %s47, %s49
      %p56 = scmp.eq.s32.totalorder %s18, 1
      %p57 = por %p55, %p56
      %p58 = scmp.ne.s32.totalorder %s49, %s50
      %p59 = scmp.eq.s32.totalorder %s18, 0
      %p60 = por %p58, %p59
      %p61 = scmp.ne.s32.totalorder %s49, %s50
      %p62 = scmp.eq.s32.totalorder %s19, 1
      %p63 = por %p61, %p62
      %p65 = scmp.ne.s32.totalorder %s50, %s64
      %p66 = scmp.eq.s32.totalorder %s19, 0
      %p67 = por %p65, %p66
      %s69 = sadd.s32 %s68, 1
      %p72 = scmp.eq.s32.totalorder %s13, 1
      %p73 = scmp.ne.s32.totalorder %s68, %s70
      %p74 = scmp.eq.s32.totalorder %s13, 0
      %p75 = por %p73, %p74
      %p76 = scmp.ne.s32.totalorder %s68, %s70
      %p77 = scmp.eq.s32.totalorder %s18, 1
      %p78 = por %p76, %p77
      %p79 = scmp.ne.s32.totalorder %s70, %s71
      %p80 = scmp.eq.s32.totalorder %s18, 0
      %p81 = por %p79, %p80
      %p82 = scmp.ne.s32.totalorder %s70, %s71
      %p83 = scmp.eq.s32.totalorder %s19, 1
      %p84 = por %p82, %p83
      %p86 = scmp.ne.s32.totalorder %s71, %s85
      %p87 = scmp.eq.s32.totalorder %s19, 0
      %p88 = por %p86, %p87
      %s90 = sadd.s32 %s89, 1
      %p93 = scmp.eq.s32.totalorder %s13, 1
      %p94 = scmp.ne.s32.totalorder %s89, %s91
      %p95 = scmp.eq.s32.totalorder %s13, 0
      %p96 = por %p94, %p95
      %p97 = scmp.ne.s32.totalorder %s89, %s91
      %p98 = scmp.eq.s32.totalorder %s18, 1
      %p99 = por %p97, %p98
      %p100 = scmp.ne.s32.totalorder %s91, %s92
      %p101 = scmp.eq.s32.totalorder %s18, 0
      %p102 = por %p100, %p101
      %p103 = scmp.ne.s32.totalorder %s91, %s92
      %p104 = scmp.eq.s32.totalorder %s19, 1
      %p105 = por %p103, %p104
      %p107 = scmp.ne.s32.totalorder %s92, %s106
      %p108 = scmp.eq.s32.totalorder %s19, 0
      %p109 = por %p107, %p108
      %s110 = ssub.s32 %s13, %s20
      %p111 = scmp.eq.s32.totalorder %s110, 0
      %s113 = sadd.s32 %s112, 1
      %s114 = scalar_select %p111, %s112, %s113
      %p117 = pneg %p111
      %p118 = scmp.eq.s32.totalorder %s13, 1
      %p119 = por %p117, %p118
      %p120 = scmp.ne.s32.totalorder %s112, %s115
      %p121 = scmp.eq.s32.totalorder %s13, 0
      %p122 = por %p120, %p121
      %p123 = scmp.ne.s32.totalorder %s112, %s115
      %p124 = scmp.eq.s32.totalorder %s18, 1
      %p125 = por %p123, %p124
      %p126 = scmp.ne.s32.totalorder %s115, %s116
      %p127 = scmp.eq.s32.totalorder %s18, 0
      %p128 = por %p126, %p127
      %p129 = scmp.ne.s32.totalorder %s115, %s116
      %p130 = scmp.eq.s32.totalorder %s19, 1
      %p131 = por %p129, %p130
      %p133 = scmp.ne.s32.totalorder %s116, %s132
      %p134 = scmp.eq.s32.totalorder %s19, 0
      %p135 = por %p133, %p134
      %p136 = scmp.le.s32.totalorder 1, %s13
      %p137 = scmp.lt.s32.totalorder %s13, 3
      %p138 = pnand %p136, %p137
      %p139 = pneg %p138
      // Predicated region
      $region9: #{tpu_custom_call.1} parent=5 // pred_check
        _
      $region10: #{tpu_custom_call.1} parent=5 // pred_check_branch
        %141 = sbr.rel (%p138) target = $region12
      $region11: #{tpu_custom_call.1} parent=5 // pred_region
        %s142 = ssub.s32 %s13, 1
        // Predicated region
        $region13: #{tpu_custom_call.1} parent=11 // pred_check
          %p143 = pneg %p60
        $region14: #{tpu_custom_call.1} parent=11 // pred_check_branch
          %145 = sbr.rel (%p143) target = $region16
        $region15: #{tpu_custom_call.1} parent=11 // pred_region
          _
        $region16: #{tpu_custom_call.1} parent=11 // pred_fallthru
          _
        // Predicated region
        $region17: #{tpu_custom_call.1} parent=11 // pred_check
          %p146 = pneg %p81
        $region18: #{tpu_custom_call.1} parent=11 // pred_check_branch
          %148 = sbr.rel (%p146) target = $region20
        $region19: #{tpu_custom_call.1} parent=11 // pred_region
          _
        $region20: #{tpu_custom_call.1} parent=11 // pred_fallthru
          _
        // Predicated region
        $region21: #{tpu_custom_call.1} parent=11 // pred_check
          %p149 = pneg %p102
        $region22: #{tpu_custom_call.1} parent=11 // pred_check_branch
          %151 = sbr.rel (%p149) target = $region24
        $region23: #{tpu_custom_call.1} parent=11 // pred_region
          _
        $region24: #{tpu_custom_call.1} parent=11 // pred_fallthru
          _
      $region12: #{tpu_custom_call.1} parent=5 // pred_fallthru
        _
      %p152 = scmp.lt.s32.totalorder %s13, 2
      // Predicated region
      $region25: #{tpu_custom_call.1} parent=5 // pred_check
        %p153 = pneg %p152
      $region26: #{tpu_custom_call.1} parent=5 // pred_check_branch
        %155 = sbr.rel (%p153) target = $region28
      $region27: #{tpu_custom_call.1} parent=5 // pred_region
        // Predicated region
        $region29: #{tpu_custom_call.1} parent=27 // pred_check
          %p156 = pneg %p33
        $region30: #{tpu_custom_call.1} parent=27 // pred_check_branch
          %158 = sbr.rel (%p156) target = $region32
        $region31: #{tpu_custom_call.1} parent=27 // pred_region
          %p159 = scmp.lt.s32.totalorder %s13, 1
          %s160 = scalar_select %p159, %s13, 1
          %s161 = smul.addr %s160, 20
          %s162 = smul.addr %s161, 8
          %s163 = scalar_lea.vmem %s0, %s162
        $region32: #{tpu_custom_call.1} parent=27 // pred_fallthru
          _
      $region28: #{tpu_custom_call.1} parent=5 // pred_fallthru
        _
      %p164 = scmp.le.s32.totalorder 1, %s13
      %p165 = scmp.lt.s32.totalorder %s13, 3
      %p166 = pnand %p164, %p165
      %p167 = pneg %p166
      // Predicated region
      $region33: #{tpu_custom_call.1} parent=5 // pred_check
        _
      $region34: #{tpu_custom_call.1} parent=5 // pred_check_branch
        %169 = sbr.rel (%p166) target = $region36
      $region35: #{tpu_custom_call.1} parent=5 // pred_region
        %s170 = ssub.s32 %s13, 1
        %p171 = scmp.lt.s32.totalorder %s18, 1
        %s172 = scalar_select %p171, %s18, 1
        %s173 = smul.addr %s172, 20
        %s174 = smul.addr %s173, 8
        %s175 = scalar_lea.vmem %s0, %s174
        %p176 = pneg %p39
        %p177 = pneg %p36
        %p178 = pneg %p60
        %p179 = pneg %p57
        %p180 = pneg %p81
        %p181 = pneg %p78
        %p182 = pneg %p102
        %p183 = pneg %p99
        %p184 = pneg %p128
        %p185 = pneg %p125
        %s186 = sand.u32 %s115, 1
        %s187 = scalar_lea.sflag [#allocation3], %s186
        %s188 = sand.u32 %s115, 1
        %s189 = smul.addr %s188, 64
        %s190 = scalar_lea.vmem [#allocation2], %s189
        %p191 = scmp.lt.s32.totalorder %s18, 1
        %s192 = scalar_select %p191, %s18, 1
        %s193 = smul.addr %s192, 20
        %s194 = smul.addr %s193, 8
        %s195 = scalar_lea.vmem %s0, %s194
        %v196 = vld [vmem:[%s195] sm:$0xff]
        %v197 = vld [vmem:[%s195 + $0x10] sm:$0xff]
        %v198 = vld [vmem:[%s195 + $0x20] sm:$0xff]
        %v199 = vld [vmem:[%s195 + $0x30] sm:$0xff]
        %v200 = vld [vmem:[%s195 + $0x40] sm:$0xff]
        %v201 = vld [vmem:[%s195 + $0x50] sm:$0xff]
        %v202 = vld [vmem:[%s195 + $0x60] sm:$0xff]
        %v203 = vld [vmem:[%s195 + $0x70] sm:$0xff]
        %v204 = vld [vmem:[%s1] sm:$0xff]
        %v205 = vld [vmem:[%s1 + $0x8] sm:$0xff]
        %v206 = vld [vmem:[%s195 + $0x1] sm:$0xff]
        %v207 = vld [vmem:[%s195 + $0x11] sm:$0xff]
        %v208 = vld [vmem:[%s195 + $0x21] sm:$0xff]
        %v209 = vld [vmem:[%s195 + $0x31] sm:$0xff]
        %v210 = vld [vmem:[%s195 + $0x41] sm:$0xff]
        %v211 = vld [vmem:[%s195 + $0x51] sm:$0xff]
        %v212 = vld [vmem:[%s195 + $0x61] sm:$0xff]
        %v213 = vld [vmem:[%s195 + $0x71] sm:$0xff]
        %s214 = scalar_lea.vmem %s1, 16
        %v215 = vld [vmem:[%s214] sm:$0xff]
        %v216 = vld [vmem:[%s214 + $0x8] sm:$0xff]
        %vm217 = vcmask 130048
        %v219 = vsel %vm217, %v206, 0
        %v222 = vsel %vm217, %v207, 0
        %v225 = vsel %vm217, %v208, 0
        %v228 = vsel %vm217, %v209, 0
        %v231 = vsel %vm217, %v210, 0
        %v234 = vsel %vm217, %v211, 0
        %v237 = vsel %vm217, %v212, 0
        %v240 = vsel %vm217, %v213, 0
        %242 = vmatprep.subr.mxu0 0.0
        %243 = vmatpush1.msra.mxu0 %v215
        %244 = vmatprep.subr.mxu0 0.0
        %245 = vmatpush1.msra.mxu0 %v216
        %246 = vmatprep.subr.mxu0 0.0
        %247 = vmatpush1.msra.mxu0 0.0
        %248 = vmatprep.subr.mxu0 0.0
        %249 = vmatpush1.msra.mxu0 0.0
        %250 = vmatprep.subr.mxu0 0.0
        %251 = vmatpush1.msra.mxu0 0.0
        %252 = vmatprep.subr.mxu0 0.0
        %253 = vmatpush1.msra.mxu0 0.0
        %254 = vmatprep.subr.mxu0 0.0
        %255 = vmatpush1.msra.mxu0 0.0
        %256 = vmatprep.subr.mxu0 0.0
        %257 = vmatpush1.msra.mxu0 0.0
        %258 = vmatprep.subr.mxu0 0.0
        %259 = vmatpush1.msra.mxu0 0.0
        %260 = vmatprep.subr.mxu0 0.0
        %261 = vmatpush1.msra.mxu0 0.0
        %262 = vmatprep.subr.mxu0 0.0
        %263 = vmatpush1.msra.mxu0 0.0
        %264 = vmatprep.subr.mxu0 0.0
        %265 = vmatpush1.msra.mxu0 0.0
        %266 = vmatprep.subr.mxu0 0.0
        %267 = vmatpush1.msra.mxu0 0.0
        %268 = vmatprep.subr.mxu0 0.0
        %269 = vmatpush1.msra.mxu0 0.0
        %270 = vmatprep.subr.mxu0 0.0
        %271 = vmatpush1.msra.mxu0 0.0
        %272 = vmatprep.subr.mxu0 0.0
        %273 = vmatpush1.msra.mxu0 0.0
        %274 = vmatprep.subr.mxu0 0.0
        %275 = vmatpush1.msra.mxu0 0.0
        %276 = vmatprep.subr.mxu0 0.0
        %277 = vmatpush1.msra.mxu0 0.0
        %278 = vmatprep.subr.mxu0 0.0
        %279 = vmatpush1.msra.mxu0 0.0
        %280 = vmatprep.subr.mxu0 0.0
        %281 = vmatpush1.msra.mxu0 0.0
        %282 = vmatprep.subr.mxu0 0.0
        %283 = vmatpush1.msra.mxu0 0.0
        %284 = vmatprep.subr.mxu0 0.0
        %285 = vmatpush1.msra.mxu0 0.0
        %286 = vmatprep.subr.mxu0 0.0
        %287 = vmatpush1.msra.mxu0 0.0
        %288 = vmatprep.subr.mxu0 0.0
        %289 = vmatpush1.msra.mxu0 0.0
        %290 = vmatprep.subr.mxu0 0.0
        %291 = vmatpush1.msra.mxu0 0.0
        %292 = vmatprep.subr.mxu0 0.0
        %293 = vmatpush1.msra.mxu0 0.0
        %294 = vmatprep.subr.mxu0 0.0
        %295 = vmatpush1.msra.mxu0 0.0
        %296 = vmatprep.subr.mxu0 0.0
        %297 = vmatpush1.msra.mxu0 0.0
        %298 = vmatprep.subr.mxu0 0.0
        %299 = vmatpush1.msra.mxu0 0.0
        %300 = vmatprep.subr.mxu0 0.0
        %301 = vmatpush1.msra.mxu0 0.0
        %302 = vmatprep.subr.mxu0 0.0
        %303 = vmatpush1.msra.mxu0 0.0
        %304 = vmatprep.subr.mxu0 0.0
        %305 = vmatpush1.msra.mxu0 0.0
        %306 = vmatprep.mubr.f32.mxu0 0.0
        %307 = vmatmul.mubr.f32.gmra.mrb[0].mxu0 %v219
        %v308 = vpop.f32.mrb[0].mxu0
        %v309 = vadd.f32 0.0, %v308
        %v310 = vpop.f32.mrb[0].mxu0
        %311 = vmatprep.mubr.f32.mxu0 0.0
        %312 = vmatmul.mubr.f32.gmra.mrb[0].mxu0 %v222
        %v313 = vpop.f32.mrb[0].mxu0
        %v314 = vadd.f32 0.0, %v313
        %v315 = vpop.f32.mrb[0].mxu0
        %316 = vmatprep.mubr.f32.mxu0 0.0
        %317 = vmatmul.mubr.f32.gmra.mrb[0].mxu0 %v225
        %v318 = vpop.f32.mrb[0].mxu0
        %v319 = vadd.f32 0.0, %v318
        %v320 = vpop.f32.mrb[0].mxu0
        %321 = vmatprep.mubr.f32.mxu0 0.0
        %322 = vmatmul.mubr.f32.gmra.mrb[0].mxu0 %v228
        %v323 = vpop.f32.mrb[0].mxu0
        %v324 = vadd.f32 0.0, %v323
        %v325 = vpop.f32.mrb[0].mxu0
        %326 = vmatprep.mubr.f32.mxu0 0.0
        %327 = vmatmul.mubr.f32.gmra.mrb[0].mxu0 %v231
        %v328 = vpop.f32.mrb[0].mxu0
        %v329 = vadd.f32 0.0, %v328
        %v330 = vpop.f32.mrb[0].mxu0
        %331 = vmatprep.mubr.f32.mxu0 0.0
        %332 = vmatmul.mubr.f32.gmra.mrb[0].mxu0 %v234
        %v333 = vpop.f32.mrb[0].mxu0
        %v334 = vadd.f32 0.0, %v333
        %v335 = vpop.f32.mrb[0].mxu0
        %336 = vmatprep.mubr.f32.mxu0 0.0
        %337 = vmatmul.mubr.f32.gmra.mrb[0].mxu0 %v237
        %v338 = vpop.f32.mrb[0].mxu0
        %v339 = vadd.f32 0.0, %v338
        %v340 = vpop.f32.mrb[0].mxu0
        %341 = vmatprep.mubr.f32.mxu0 0.0
        %342 = vmatmul.mubr.f32.gmra.mrb[0].mxu0 %v240
        %v343 = vpop.f32.mrb[0].mxu0
        %v344 = vadd.f32 0.0, %v343
        %v345 = vpop.f32.mrb[0].mxu0
        %346 = vdwg.mxu0
        %v348 = vsel %vm217, %v196, 0
        %v351 = vsel %vm217, %v197, 0
        %v354 = vsel %vm217, %v198, 0
        %v357 = vsel %vm217, %v199, 0
        %v360 = vsel %vm217, %v200, 0
        %v363 = vsel %vm217, %v201, 0
        %v366 = vsel %vm217, %v202, 0
        %v369 = vsel %vm217, %v203, 0
        %371 = vmatprep.subr.mxu0 0.0
        %372 = vmatpush1.msra.mxu0 %v204
        %373 = vmatprep.subr.mxu0 0.0
        %374 = vmatpush1.msra.mxu0 %v205
        %375 = vmatprep.subr.mxu0 0.0
        %376 = vmatpush1.msra.mxu0 0.0
        %377 = vmatprep.subr.mxu0 0.0
        %378 = vmatpush1.msra.mxu0 0.0
        %379 = vmatprep.subr.mxu0 0.0
        %380 = vmatpush1.msra.mxu0 0.0
        %381 = vmatprep.subr.mxu0 0.0
        %382 = vmatpush1.msra.mxu0 0.0
        %383 = vmatprep.subr.mxu0 0.0
        %384 = vmatpush1.msra.mxu0 0.0
        %385 = vmatprep.subr.mxu0 0.0
        %386 = vmatpush1.msra.mxu0 0.0
        %387 = vmatprep.subr.mxu0 0.0
        %388 = vmatpush1.msra.mxu0 0.0
        %389 = vmatprep.subr.mxu0 0.0
        %390 = vmatpush1.msra.mxu0 0.0
        %391 = vmatprep.subr.mxu0 0.0
        %392 = vmatpush1.msra.mxu0 0.0
        %393 = vmatprep.subr.mxu0 0.0
        %394 = vmatpush1.msra.mxu0 0.0
        %395 = vmatprep.subr.mxu0 0.0
        %396 = vmatpush1.msra.mxu0 0.0
        %397 = vmatprep.subr.mxu0 0.0
        %398 = vmatpush1.msra.mxu0 0.0
        %399 = vmatprep.subr.mxu0 0.0
        %400 = vmatpush1.msra.mxu0 0.0
        %401 = vmatprep.subr.mxu0 0.0
        %402 = vmatpush1.msra.mxu0 0.0
        %403 = vmatprep.subr.mxu0 0.0
        %404 = vmatpush1.msra.mxu0 0.0
        %405 = vmatprep.subr.mxu0 0.0
        %406 = vmatpush1.msra.mxu0 0.0
        %407 = vmatprep.subr.mxu0 0.0
        %408 = vmatpush1.msra.mxu0 0.0
        %409 = vmatprep.subr.mxu0 0.0
        %410 = vmatpush1.msra.mxu0 0.0
        %411 = vmatprep.subr.mxu0 0.0
        %412 = vmatpush1.msra.mxu0 0.0
        %413 = vmatprep.subr.mxu0 0.0
        %414 = vmatpush1.msra.mxu0 0.0
        %415 = vmatprep.subr.mxu0 0.0
        %416 = vmatpush1.msra.mxu0 0.0
        %417 = vmatprep.subr.mxu0 0.0
        %418 = vmatpush1.msra.mxu0 0.0
        %419 = vmatprep.subr.mxu0 0.0
        %420 = vmatpush1.msra.mxu0 0.0
        %421 = vmatprep.subr.mxu0 0.0
        %422 = vmatpush1.msra.mxu0 0.0
        %423 = vmatprep.subr.mxu0 0.0
        %424 = vmatpush1.msra.mxu0 0.0
        %425 = vmatprep.subr.mxu0 0.0
        %426 = vmatpush1.msra.mxu0 0.0
        %427 = vmatprep.subr.mxu0 0.0
        %428 = vmatpush1.msra.mxu0 0.0
        %429 = vmatprep.subr.mxu0 0.0
        %430 = vmatpush1.msra.mxu0 0.0
        %431 = vmatprep.subr.mxu0 0.0
        %432 = vmatpush1.msra.mxu0 0.0
        %433 = vmatprep.subr.mxu0 0.0
        %434 = vmatpush1.msra.mxu0 0.0
        %435 = vmatprep.mubr.f32.mxu0 0.0
        %436 = vmatmul.mubr.f32.gmra.mrb[0].mxu0 %v348
        %v437 = vpop.f32.mrb[0].mxu0
        %v438 = vadd.f32 %v309, %v437
        %v439 = vpop.f32.mrb[0].mxu0
        %440 = vmatprep.mubr.f32.mxu0 0.0
        %441 = vmatmul.mubr.f32.gmra.mrb[0].mxu0 %v351
        %v442 = vpop.f32.mrb[0].mxu0
        %v443 = vadd.f32 %v314, %v442
        %v444 = vpop.f32.mrb[0].mxu0
        %445 = vmatprep.mubr.f32.mxu0 0.0
        %446 = vmatmul.mubr.f32.gmra.mrb[0].mxu0 %v354
        %v447 = vpop.f32.mrb[0].mxu0
        %v448 = vadd.f32 %v319, %v447
        %v449 = vpop.f32.mrb[0].mxu0
        %450 = vmatprep.mubr.f32.mxu0 0.0
        %451 = vmatmul.mubr.f32.gmra.mrb[0].mxu0 %v357
        %v452 = vpop.f32.mrb[0].mxu0
        %v453 = vadd.f32 %v324, %v452
        %v454 = vpop.f32.mrb[0].mxu0
        %455 = vmatprep.mubr.f32.mxu0 0.0
        %456 = vmatmul.mubr.f32.gmra.mrb[0].mxu0 %v360
        %v457 = vpop.f32.mrb[0].mxu0
        %v458 = vadd.f32 %v329, %v457
        %v459 = vpop.f32.mrb[0].mxu0
        %460 = vmatprep.mubr.f32.mxu0 0.0
        %461 = vmatmul.mubr.f32.gmra.mrb[0].mxu0 %v363
        %v462 = vpop.f32.mrb[0].mxu0
        %v463 = vadd.f32 %v334, %v462
        %v464 = vpop.f32.mrb[0].mxu0
        %465 = vmatprep.mubr.f32.mxu0 0.0
        %466 = vmatmul.mubr.f32.gmra.mrb[0].mxu0 %v366
        %v467 = vpop.f32.mrb[0].mxu0
        %v468 = vadd.f32 %v339, %v467
        %v469 = vpop.f32.mrb[0].mxu0
        %470 = vmatprep.mubr.f32.mxu0 0.0
        %471 = vmatmul.mubr.f32.gmra.mrb[0].mxu0 %v369
        %v472 = vpop.f32.mrb[0].mxu0
        %v473 = vadd.f32 %v344, %v472
        %v474 = vpop.f32.mrb[0].mxu0
        %475 = vdwg.mxu0
        %v476 = vld [vmem:[%s195 + $0x2] sm:$0xff]
        %v477 = vld [vmem:[%s195 + $0x12] sm:$0xff]
        %v478 = vld [vmem:[%s195 + $0x22] sm:$0xff]
        %v479 = vld [vmem:[%s195 + $0x32] sm:$0xff]
        %v480 = vld [vmem:[%s195 + $0x42] sm:$0xff]
        %v481 = vld [vmem:[%s195 + $0x52] sm:$0xff]
        %v482 = vld [vmem:[%s195 + $0x62] sm:$0xff]
        %v483 = vld [vmem:[%s195 + $0x72] sm:$0xff]
        %s484 = scalar_lea.vmem %s1, 32
        %v485 = vld [vmem:[%s484] sm:$0xff]
        %v486 = vld [vmem:[%s484 + $0x8] sm:$0xff]
        %v488 = vsel %vm217, %v476, 0
        %v491 = vsel %vm217, %v477, 0
        %v494 = vsel %vm217, %v478, 0
        %v497 = vsel %vm217, %v479, 0
        %v500 = vsel %vm217, %v480, 0
        %v503 = vsel %vm217, %v481, 0
        %v506 = vsel %vm217, %v482, 0
        %v509 = vsel %vm217, %v483, 0
        %511 = vmatprep.subr.mxu0 0.0
        %512 = vmatpush1.msra.mxu0 %v485
        %513 = vmatprep.subr.mxu0 0.0
        %514 = vmatpush1.msra.mxu0 %v486
        %515 = vmatprep.subr.mxu0 0.0
        %516 = vmatpush1.msra.mxu0 0.0
        %517 = vmatprep.subr.mxu0 0.0
        %518 = vmatpush1.msra.mxu0 0.0
        %519 = vmatprep.subr.mxu0 0.0
        %520 = vmatpush1.msra.mxu0 0.0
        %521 = vmatprep.subr.mxu0 0.0
        %522 = vmatpush1.msra.mxu0 0.0
        %523 = vmatprep.subr.mxu0 0.0
        %524 = vmatpush1.msra.mxu0 0.0
        %525 = vmatprep.subr.mxu0 0.0
        %526 = vmatpush1.msra.mxu0 0.0
        %527 = vmatprep.subr.mxu0 0.0
        %528 = vmatpush1.msra.mxu0 0.0
        %529 = vmatprep.subr.mxu0 0.0
        %530 = vmatpush1.msra.mxu0 0.0
        %531 = vmatprep.subr.mxu0 0.0
        %532 = vmatpush1.msra.mxu0 0.0
        %533 = vmatprep.subr.mxu0 0.0
        %534 = vmatpush1.msra.mxu0 0.0
        %535 = vmatprep.subr.mxu0 0.0
        %536 = vmatpush1.msra.mxu0 0.0
        %537 = vmatprep.subr.mxu0 0.0
        %538 = vmatpush1.msra.mxu0 0.0
        %539 = vmatprep.subr.mxu0 0.0
        %540 = vmatpush1.msra.mxu0 0.0
        %541 = vmatprep.subr.mxu0 0.0
        %542 = vmatpush1.msra.mxu0 0.0
        %543 = vmatprep.subr.mxu0 0.0
        %544 = vmatpush1.msra.mxu0 0.0
        %545 = vmatprep.subr.mxu0 0.0
        %546 = vmatpush1.msra.mxu0 0.0
        %547 = vmatprep.subr.mxu0 0.0
        %548 = vmatpush1.msra.mxu0 0.0
        %549 = vmatprep.subr.mxu0 0.0
        %550 = vmatpush1.msra.mxu0 0.0
        %551 = vmatprep.subr.mxu0 0.0
        %552 = vmatpush1.msra.mxu0 0.0
        %553 = vmatprep.subr.mxu0 0.0
        %554 = vmatpush1.msra.mxu0 0.0
        %555 = vmatprep.subr.mxu0 0.0
        %556 = vmatpush1.msra.mxu0 0.0
        %557 = vmatprep.subr.mxu0 0.0
        %558 = vmatpush1.msra.mxu0 0.0
        %559 = vmatprep.subr.mxu0 0.0
        %560 = vmatpush1.msra.mxu0 0.0
        %561 = vmatprep.subr.mxu0 0.0
        %562 = vmatpush1.msra.mxu0 0.0
        %563 = vmatprep.subr.mxu0 0.0
        %564 = vmatpush1.msra.mxu0 0.0
        %565 = vmatprep.subr.mxu0 0.0
        %566 = vmatpush1.msra.mxu0 0.0
        %567 = vmatprep.subr.mxu0 0.0
        %568 = vmatpush1.msra.mxu0 0.0
        %569 = vmatprep.subr.mxu0 0.0
        %570 = vmatpush1.msra.mxu0 0.0
        %571 = vmatprep.subr.mxu0 0.0
        %572 = vmatpush1.msra.mxu0 0.0
        %573 = vmatprep.subr.mxu0 0.0
        %574 = vmatpush1.msra.mxu0 0.0
        %575 = vmatprep.mubr.f32.mxu0 0.0
        %576 = vmatmul.mubr.f32.gmra.mrb[0].mxu0 %v488
        %v577 = vpop.f32.mrb[0].mxu0
        %v578 = vadd.f32 0.0, %v577
        %v579 = vpop.f32.mrb[0].mxu0
        %580 = vmatprep.mubr.f32.mxu0 0.0
        %581 = vmatmul.mubr.f32.gmra.mrb[0].mxu0 %v491
        %v582 = vpop.f32.mrb[0].mxu0
        %v583 = vadd.f32 0.0, %v582
        %v584 = vpop.f32.mrb[0].mxu0
        %585 = vmatprep.mubr.f32.mxu0 0.0
        %586 = vmatmul.mubr.f32.gmra.mrb[0].mxu0 %v494
        %v587 = vpop.f32.mrb[0].mxu0
        %v588 = vadd.f32 0.0, %v587
        %v589 = vpop.f32.mrb[0].mxu0
        %590 = vmatprep.mubr.f32.mxu0 0.0
        %591 = vmatmul.mubr.f32.gmra.mrb[0].mxu0 %v497
        %v592 = vpop.f32.mrb[0].mxu0
        %v593 = vadd.f32 0.0, %v592
        %v594 = vpop.f32.mrb[0].mxu0
        %595 = vmatprep.mubr.f32.mxu0 0.0
        %596 = vmatmul.mubr.f32.gmra.mrb[0].mxu0 %v500
        %v597 = vpop.f32.mrb[0].mxu0
        %v598 = vadd.f32 0.0, %v597
        %v599 = vpop.f32.mrb[0].mxu0
        %600 = vmatprep.mubr.f32.mxu0 0.0
        %601 = vmatmul.mubr.f32.gmra.mrb[0].mxu0 %v503
        %v602 = vpop.f32.mrb[0].mxu0
        %v603 = vadd.f32 0.0, %v602
        %v604 = vpop.f32.mrb[0].mxu0
        %605 = vmatprep.mubr.f32.mxu0 0.0
        %606 = vmatmul.mubr.f32.gmra.mrb[0].mxu0 %v506
        %v607 = vpop.f32.mrb[0].mxu0
        %v608 = vadd.f32 0.0, %v607
        %v609 = vpop.f32.mrb[0].mxu0
        %610 = vmatprep.mubr.f32.mxu0 0.0
        %611 = vmatmul.mubr.f32.gmra.mrb[0].mxu0 %v509
        %v612 = vpop.f32.mrb[0].mxu0
        %v613 = vadd.f32 0.0, %v612
        %v614 = vpop.f32.mrb[0].mxu0
        %615 = vdwg.mxu0
        %v616 = vadd.f32 %v438, %v578
        %v617 = vadd.f32 %v443, %v583
        %v618 = vadd.f32 %v448, %v588
        %v619 = vadd.f32 %v453, %v593
        %v620 = vadd.f32 %v458, %v598
        %v621 = vadd.f32 %v463, %v603
        %v622 = vadd.f32 %v468, %v608
        %v623 = vadd.f32 %v473, %v613
        %s624 = scalar_lea.vmem %s195, 16
        %v625 = vld [vmem:[%s624] sm:$0xff]
        %v626 = vld [vmem:[%s624 + $0x10] sm:$0xff]
        %v627 = vld [vmem:[%s624 + $0x20] sm:$0xff]
        %v628 = vld [vmem:[%s624 + $0x30] sm:$0xff]
        %v629 = vld [vmem:[%s624 + $0x40] sm:$0xff]
        %v630 = vld [vmem:[%s624 + $0x50] sm:$0xff]
        %v631 = vld [vmem:[%s624 + $0x60] sm:$0xff]
        %v632 = vld [vmem:[%s624 + $0x70] sm:$0xff]
        %s633 = scalar_lea.vmem %s1, 48
        %v634 = vld [vmem:[%s633] sm:$0xff]
        %v635 = vld [vmem:[%s633 + $0x8] sm:$0xff]
        %v637 = vsel %vm217, %v625, 0
        %v640 = vsel %vm217, %v626, 0
        %v643 = vsel %vm217, %v627, 0
        %v646 = vsel %vm217, %v628, 0
        %v649 = vsel %vm217, %v629, 0
        %v652 = vsel %vm217, %v630, 0
        %v655 = vsel %vm217, %v631, 0
        %v658 = vsel %vm217, %v632, 0
        %660 = vmatprep.subr.mxu0 0.0
        %661 = vmatpush1.msra.mxu0 %v634
        %662 = vmatprep.subr.mxu0 0.0
        %663 = vmatpush1.msra.mxu0 %v635
        %664 = vmatprep.subr.mxu0 0.0
        %665 = vmatpush1.msra.mxu0 0.0
        %666 = vmatprep.subr.mxu0 0.0
        %667 = vmatpush1.msra.mxu0 0.0
        %668 = vmatprep.subr.mxu0 0.0
        %669 = vmatpush1.msra.mxu0 0.0
        %670 = vmatprep.subr.mxu0 0.0
        %671 = vmatpush1.msra.mxu0 0.0
        %672 = vmatprep.subr.mxu0 0.0
        %673 = vmatpush1.msra.mxu0 0.0
        %674 = vmatprep.subr.mxu0 0.0
        %675 = vmatpush1.msra.mxu0 0.0
        %676 = vmatprep.subr.mxu0 0.0
        %677 = vmatpush1.msra.mxu0 0.0
        %678 = vmatprep.subr.mxu0 0.0
        %679 = vmatpush1.msra.mxu0 0.0
        %680 = vmatprep.subr.mxu0 0.0
        %681 = vmatpush1.msra.mxu0 0.0
        %682 = vmatprep.subr.mxu0 0.0
        %683 = vmatpush1.msra.mxu0 0.0
        %684 = vmatprep.subr.mxu0 0.0
        %685 = vmatpush1.msra.mxu0 0.0
        %686 = vmatprep.subr.mxu0 0.0
        %687 = vmatpush1.msra.mxu0 0.0
        %688 = vmatprep.subr.mxu0 0.0
        %689 = vmatpush1.msra.mxu0 0.0
        %690 = vmatprep.subr.mxu0 0.0
        %691 = vmatpush1.msra.mxu0 0.0
        %692 = vmatprep.subr.mxu0 0.0
        %693 = vmatpush1.msra.mxu0 0.0
        %694 = vmatprep.subr.mxu0 0.0
        %695 = vmatpush1.msra.mxu0 0.0
        %696 = vmatprep.subr.mxu0 0.0
        %697 = vmatpush1.msra.mxu0 0.0
        %698 = vmatprep.subr.mxu0 0.0
        %699 = vmatpush1.msra.mxu0 0.0
        %700 = vmatprep.subr.mxu0 0.0
        %701 = vmatpush1.msra.mxu0 0.0
        %702 = vmatprep.subr.mxu0 0.0
        %703 = vmatpush1.msra.mxu0 0.0
        %704 = vmatprep.subr.mxu0 0.0
        %705 = vmatpush1.msra.mxu0 0.0
        %706 = vmatprep.subr.mxu0 0.0
        %707 = vmatpush1.msra.mxu0 0.0
        %708 = vmatprep.subr.mxu0 0.0
        %709 = vmatpush1.msra.mxu0 0.0
        %710 = vmatprep.subr.mxu0 0.0
        %711 = vmatpush1.msra.mxu0 0.0
        %712 = vmatprep.subr.mxu0 0.0
        %713 = vmatpush1.msra.mxu0 0.0
        %714 = vmatprep.subr.mxu0 0.0
        %715 = vmatpush1.msra.mxu0 0.0
        %716 = vmatprep.subr.mxu0 0.0
        %717 = vmatpush1.msra.mxu0 0.0
        %718 = vmatprep.subr.mxu0 0.0
        %719 = vmatpush1.msra.mxu0 0.0
        %720 = vmatprep.subr.mxu0 0.0
        %721 = vmatpush1.msra.mxu0 0.0
        %722 = vmatprep.subr.mxu0 0.0
        %723 = vmatpush1.msra.mxu0 0.0
        %724 = vmatprep.mubr.f32.mxu0 0.0
        %725 = vmatmul.mubr.f32.gmra.mrb[0].mxu0 %v637
        %v726 = vpop.f32.mrb[0].mxu0
        %v727 = vadd.f32 0.0, %v726
        %v728 = vpop.f32.mrb[0].mxu0
        %729 = vmatprep.mubr.f32.mxu0 0.0
        %730 = vmatmul.mubr.f32.gmra.mrb[0].mxu0 %v640
        %v731 = vpop.f32.mrb[0].mxu0
        %v732 = vadd.f32 0.0, %v731
        %v733 = vpop.f32.mrb[0].mxu0
        %734 = vmatprep.mubr.f32.mxu0 0.0
        %735 = vmatmul.mubr.f32.gmra.mrb[0].mxu0 %v643
        %v736 = vpop.f32.mrb[0].mxu0
        %v737 = vadd.f32 0.0, %v736
        %v738 = vpop.f32.mrb[0].mxu0
        %739 = vmatprep.mubr.f32.mxu0 0.0
        %740 = vmatmul.mubr.f32.gmra.mrb[0].mxu0 %v646
        %v741 = vpop.f32.mrb[0].mxu0
        %v742 = vadd.f32 0.0, %v741
        %v743 = vpop.f32.mrb[0].mxu0
        %744 = vmatprep.mubr.f32.mxu0 0.0
        %745 = vmatmul.mubr.f32.gmra.mrb[0].mxu0 %v649
        %v746 = vpop.f32.mrb[0].mxu0
        %v747 = vadd.f32 0.0, %v746
        %v748 = vpop.f32.mrb[0].mxu0
        %749 = vmatprep.mubr.f32.mxu0 0.0
        %750 = vmatmul.mubr.f32.gmra.mrb[0].mxu0 %v652
        %v751 = vpop.f32.mrb[0].mxu0
        %v752 = vadd.f32 0.0, %v751
        %v753 = vpop.f32.mrb[0].mxu0
        %754 = vmatprep.mubr.f32.mxu0 0.0
        %755 = vmatmul.mubr.f32.gmra.mrb[0].mxu0 %v655
        %v756 = vpop.f32.mrb[0].mxu0
        %v757 = vadd.f32 0.0, %v756
        %v758 = vpop.f32.mrb[0].mxu0
        %759 = vmatprep.mubr.f32.mxu0 0.0
        %760 = vmatmul.mubr.f32.gmra.mrb[0].mxu0 %v658
        %v761 = vpop.f32.mrb[0].mxu0
        %v762 = vadd.f32 0.0, %v761
        %v763 = vpop.f32.mrb[0].mxu0
        %764 = vdwg.mxu0
        %v765 = vadd.f32 %v616, %v727
        %v766 = vadd.f32 %v617, %v732
        %v767 = vadd.f32 %v618, %v737
        %v768 = vadd.f32 %v619, %v742
        %v769 = vadd.f32 %v620, %v747
        %v770 = vadd.f32 %v621, %v752
        %v771 = vadd.f32 %v622, %v757
        %v772 = vadd.f32 %v623, %v762
        %v773 = vld [vmem:[%s624 + $0x1] sm:$0xff]
        %v774 = vld [vmem:[%s624 + $0x11] sm:$0xff]
        %v775 = vld [vmem:[%s624 + $0x21] sm:$0xff]
        %v776 = vld [vmem:[%s624 + $0x31] sm:$0xff]
        %v777 = vld [vmem:[%s624 + $0x41] sm:$0xff]
        %v778 = vld [vmem:[%s624 + $0x51] sm:$0xff]
        %v779 = vld [vmem:[%s624 + $0x61] sm:$0xff]
        %v780 = vld [vmem:[%s624 + $0x71] sm:$0xff]
        %s781 = scalar_lea.vmem %s1, 64
        %v782 = vld [vmem:[%s781] sm:$0xff]
        %v783 = vld [vmem:[%s781 + $0x8] sm:$0xff]
        %v785 = vsel %vm217, %v773, 0
        %v788 = vsel %vm217, %v774, 0
        %v791 = vsel %vm217, %v775, 0
        %v794 = vsel %vm217, %v776, 0
        %v797 = vsel %vm217, %v777, 0
        %v800 = vsel %vm217, %v778, 0
        %v803 = vsel %vm217, %v779, 0
        %v806 = vsel %vm217, %v780, 0
        %808 = vmatprep.subr.mxu0 0.0
        %809 = vmatpush1.msra.mxu0 %v782
        %810 = vmatprep.subr.mxu0 0.0
        %811 = vmatpush1.msra.mxu0 %v783
        %812 = vmatprep.subr.mxu0 0.0
        %813 = vmatpush1.msra.mxu0 0.0
        %814 = vmatprep.subr.mxu0 0.0
        %815 = vmatpush1.msra.mxu0 0.0
        %816 = vmatprep.subr.mxu0 0.0
        %817 = vmatpush1.msra.mxu0 0.0
        %818 = vmatprep.subr.mxu0 0.0
        %819 = vmatpush1.msra.mxu0 0.0
        %820 = vmatprep.subr.mxu0 0.0
        %821 = vmatpush1.msra.mxu0 0.0
        %822 = vmatprep.subr.mxu0 0.0
        %823 = vmatpush1.msra.mxu0 0.0
        %824 = vmatprep.subr.mxu0 0.0
        %825 = vmatpush1.msra.mxu0 0.0
        %826 = vmatprep.subr.mxu0 0.0
        %827 = vmatpush1.msra.mxu0 0.0
        %828 = vmatprep.subr.mxu0 0.0
        %829 = vmatpush1.msra.mxu0 0.0
        %830 = vmatprep.subr.mxu0 0.0
        %831 = vmatpush1.msra.mxu0 0.0
        %832 = vmatprep.subr.mxu0 0.0
        %833 = vmatpush1.msra.mxu0 0.0
        %834 = vmatprep.subr.mxu0 0.0
        %835 = vmatpush1.msra.mxu0 0.0
        %836 = vmatprep.subr.mxu0 0.0
        %837 = vmatpush1.msra.mxu0 0.0
        %838 = vmatprep.subr.mxu0 0.0
        %839 = vmatpush1.msra.mxu0 0.0
        %840 = vmatprep.subr.mxu0 0.0
        %841 = vmatpush1.msra.mxu0 0.0
        %842 = vmatprep.subr.mxu0 0.0
        %843 = vmatpush1.msra.mxu0 0.0
        %844 = vmatprep.subr.mxu0 0.0
        %845 = vmatpush1.msra.mxu0 0.0
        %846 = vmatprep.subr.mxu0 0.0
        %847 = vmatpush1.msra.mxu0 0.0
        %848 = vmatprep.subr.mxu0 0.0
        %849 = vmatpush1.msra.mxu0 0.0
        %850 = vmatprep.subr.mxu0 0.0
        %851 = vmatpush1.msra.mxu0 0.0
        %852 = vmatprep.subr.mxu0 0.0
        %853 = vmatpush1.msra.mxu0 0.0
        %854 = vmatprep.subr.mxu0 0.0
        %855 = vmatpush1.msra.mxu0 0.0
        %856 = vmatprep.subr.mxu0 0.0
        %857 = vmatpush1.msra.mxu0 0.0
        %858 = vmatprep.subr.mxu0 0.0
        %859 = vmatpush1.msra.mxu0 0.0
        %860 = vmatprep.subr.mxu0 0.0
        %861 = vmatpush1.msra.mxu0 0.0
        %862 = vmatprep.subr.mxu0 0.0
        %863 = vmatpush1.msra.mxu0 0.0
        %864 = vmatprep.subr.mxu0 0.0
        %865 = vmatpush1.msra.mxu0 0.0
        %866 = vmatprep.subr.mxu0 0.0
        %867 = vmatpush1.msra.mxu0 0.0
        %868 = vmatprep.subr.mxu0 0.0
        %869 = vmatpush1.msra.mxu0 0.0
        %870 = vmatprep.subr.mxu0 0.0
        %871 = vmatpush1.msra.mxu0 0.0
        %872 = vmatprep.mubr.f32.mxu0 0.0
        %873 = vmatmul.mubr.f32.gmra.mrb[0].mxu0 %v785
        %v874 = vpop.f32.mrb[0].mxu0
        %v875 = vadd.f32 0.0, %v874
        %v876 = vpop.f32.mrb[0].mxu0
        %877 = vmatprep.mubr.f32.mxu0 0.0
        %878 = vmatmul.mubr.f32.gmra.mrb[0].mxu0 %v788
        %v879 = vpop.f32.mrb[0].mxu0
        %v880 = vadd.f32 0.0, %v879
        %v881 = vpop.f32.mrb[0].mxu0
        %882 = vmatprep.mubr.f32.mxu0 0.0
        %883 = vmatmul.mubr.f32.gmra.mrb[0].mxu0 %v791
        %v884 = vpop.f32.mrb[0].mxu0
        %v885 = vadd.f32 0.0, %v884
        %v886 = vpop.f32.mrb[0].mxu0
        %887 = vmatprep.mubr.f32.mxu0 0.0
        %888 = vmatmul.mubr.f32.gmra.mrb[0].mxu0 %v794
        %v889 = vpop.f32.mrb[0].mxu0
        %v890 = vadd.f32 0.0, %v889
        %v891 = vpop.f32.mrb[0].mxu0
        %892 = vmatprep.mubr.f32.mxu0 0.0
        %893 = vmatmul.mubr.f32.gmra.mrb[0].mxu0 %v797
        %v894 = vpop.f32.mrb[0].mxu0
        %v895 = vadd.f32 0.0, %v894
        %v896 = vpop.f32.mrb[0].mxu0
        %897 = vmatprep.mubr.f32.mxu0 0.0
        %898 = vmatmul.mubr.f32.gmra.mrb[0].mxu0 %v800
        %v899 = vpop.f32.mrb[0].mxu0
        %v900 = vadd.f32 0.0, %v899
        %v901 = vpop.f32.mrb[0].mxu0
        %902 = vmatprep.mubr.f32.mxu0 0.0
        %903 = vmatmul.mubr.f32.gmra.mrb[0].mxu0 %v803
        %v904 = vpop.f32.mrb[0].mxu0
        %v905 = vadd.f32 0.0, %v904
        %v906 = vpop.f32.mrb[0].mxu0
        %907 = vmatprep.mubr.f32.mxu0 0.0
        %908 = vmatmul.mubr.f32.gmra.mrb[0].mxu0 %v806
        %v909 = vpop.f32.mrb[0].mxu0
        %v910 = vadd.f32 0.0, %v909
        %v911 = vpop.f32.mrb[0].mxu0
        %912 = vdwg.mxu0
        %v913 = vadd.f32 %v765, %v875
        %v914 = vadd.f32 %v766, %v880
        %v915 = vadd.f32 %v767, %v885
        %v916 = vadd.f32 %v768, %v890
        %v917 = vadd.f32 %v769, %v895
        %v918 = vadd.f32 %v770, %v900
        %v919 = vadd.f32 %v771, %v905
        %v920 = vadd.f32 %v772, %v910
        %v921 = vld [vmem:[%s624 + $0x2] sm:$0xff]
        %v922 = vld [vmem:[%s624 + $0x12] sm:$0xff]
        %v923 = vld [vmem:[%s624 + $0x22] sm:$0xff]
        %v924 = vld [vmem:[%s624 + $0x32] sm:$0xff]
        %v925 = vld [vmem:[%s624 + $0x42] sm:$0xff]
        %v926 = vld [vmem:[%s624 + $0x52] sm:$0xff]
        %v927 = vld [vmem:[%s624 + $0x62] sm:$0xff]
        %v928 = vld [vmem:[%s624 + $0x72] sm:$0xff]
        %s929 = scalar_lea.vmem %s1, 80
        %v930 = vld [vmem:[%s929] sm:$0xff]
        %v931 = vld [vmem:[%s929 + $0x8] sm:$0xff]
        %v933 = vsel %vm217, %v921, 0
        %v936 = vsel %vm217, %v922, 0
        %v939 = vsel %vm217, %v923, 0
        %v942 = vsel %vm217, %v924, 0
        %v945 = vsel %vm217, %v925, 0
        %v948 = vsel %vm217, %v926, 0
        %v951 = vsel %vm217, %v927, 0
        %v954 = vsel %vm217, %v928, 0
        %956 = vmatprep.subr.mxu0 0.0
        %957 = vmatpush1.msra.mxu0 %v930
        %958 = vmatprep.subr.mxu0 0.0
        %959 = vmatpush1.msra.mxu0 %v931
        %960 = vmatprep.subr.mxu0 0.0
        %961 = vmatpush1.msra.mxu0 0.0
        %962 = vmatprep.subr.mxu0 0.0
        %963 = vmatpush1.msra.mxu0 0.0
        %964 = vmatprep.subr.mxu0 0.0
        %965 = vmatpush1.msra.mxu0 0.0
        %966 = vmatprep.subr.mxu0 0.0
        %967 = vmatpush1.msra.mxu0 0.0
        %968 = vmatprep.subr.mxu0 0.0
        %969 = vmatpush1.msra.mxu0 0.0
        %970 = vmatprep.subr.mxu0 0.0
        %971 = vmatpush1.msra.mxu0 0.0
        %972 = vmatprep.subr.mxu0 0.0
        %973 = vmatpush1.msra.mxu0 0.0
        %974 = vmatprep.subr.mxu0 0.0
        %975 = vmatpush1.msra.mxu0 0.0
        %976 = vmatprep.subr.mxu0 0.0
        %977 = vmatpush1.msra.mxu0 0.0
        %978 = vmatprep.subr.mxu0 0.0
        %979 = vmatpush1.msra.mxu0 0.0
        %980 = vmatprep.subr.mxu0 0.0
        %981 = vmatpush1.msra.mxu0 0.0
        %982 = vmatprep.subr.mxu0 0.0
        %983 = vmatpush1.msra.mxu0 0.0
        %984 = vmatprep.subr.mxu0 0.0
        %985 = vmatpush1.msra.mxu0 0.0
        %986 = vmatprep.subr.mxu0 0.0
        %987 = vmatpush1.msra.mxu0 0.0
        %988 = vmatprep.subr.mxu0 0.0
        %989 = vmatpush1.msra.mxu0 0.0
        %990 = vmatprep.subr.mxu0 0.0
        %991 = vmatpush1.msra.mxu0 0.0
        %992 = vmatprep.subr.mxu0 0.0
        %993 = vmatpush1.msra.mxu0 0.0
        %994 = vmatprep.subr.mxu0 0.0
        %995 = vmatpush1.msra.mxu0 0.0
        %996 = vmatprep.subr.mxu0 0.0
        %997 = vmatpush1.msra.mxu0 0.0
        %998 = vmatprep.subr.mxu0 0.0
        %999 = vmatpush1.msra.mxu0 0.0
        %1000 = vmatprep.subr.mxu0 0.0
        %1001 = vmatpush1.msra.mxu0 0.0
        %1002 = vmatprep.subr.mxu0 0.0
        %1003 = vmatpush1.msra.mxu0 0.0
        %1004 = vmatprep.subr.mxu0 0.0
        %1005 = vmatpush1.msra.mxu0 0.0
        %1006 = vmatprep.subr.mxu0 0.0
        %1007 = vmatpush1.msra.mxu0 0.0
        %1008 = vmatprep.subr.mxu0 0.0
        %1009 = vmatpush1.msra.mxu0 0.0
        %1010 = vmatprep.subr.mxu0 0.0
        %1011 = vmatpush1.msra.mxu0 0.0
        %1012 = vmatprep.subr.mxu0 0.0
        %1013 = vmatpush1.msra.mxu0 0.0
        %1014 = vmatprep.subr.mxu0 0.0
        %1015 = vmatpush1.msra.mxu0 0.0
        %1016 = vmatprep.subr.mxu0 0.0
        %1017 = vmatpush1.msra.mxu0 0.0
        %1018 = vmatprep.subr.mxu0 0.0
        %1019 = vmatpush1.msra.mxu0 0.0
        %1020 = vmatprep.mubr.f32.mxu0 0.0
        %1021 = vmatmul.mubr.f32.gmra.mrb[0].mxu0 %v933
        %v1022 = vpop.f32.mrb[0].mxu0
        %v1023 = vadd.f32 0.0, %v1022
        %v1024 = vpop.f32.mrb[0].mxu0
        %1025 = vmatprep.mubr.f32.mxu0 0.0
        %1026 = vmatmul.mubr.f32.gmra.mrb[0].mxu0 %v936
        %v1027 = vpop.f32.mrb[0].mxu0
        %v1028 = vadd.f32 0.0, %v1027
        %v1029 = vpop.f32.mrb[0].mxu0
        %1030 = vmatprep.mubr.f32.mxu0 0.0
        %1031 = vmatmul.mubr.f32.gmra.mrb[0].mxu0 %v939
        %v1032 = vpop.f32.mrb[0].mxu0
        %v1033 = vadd.f32 0.0, %v1032
        %v1034 = vpop.f32.mrb[0].mxu0
        %1035 = vmatprep.mubr.f32.mxu0 0.0
        %1036 = vmatmul.mubr.f32.gmra.mrb[0].mxu0 %v942
        %v1037 = vpop.f32.mrb[0].mxu0
        %v1038 = vadd.f32 0.0, %v1037
        %v1039 = vpop.f32.mrb[0].mxu0
        %1040 = vmatprep.mubr.f32.mxu0 0.0
        %1041 = vmatmul.mubr.f32.gmra.mrb[0].mxu0 %v945
        %v1042 = vpop.f32.mrb[0].mxu0
        %v1043 = vadd.f32 0.0, %v1042
        %v1044 = vpop.f32.mrb[0].mxu0
        %1045 = vmatprep.mubr.f32.mxu0 0.0
        %1046 = vmatmul.mubr.f32.gmra.mrb[0].mxu0 %v948
        %v1047 = vpop.f32.mrb[0].mxu0
        %v1048 = vadd.f32 0.0, %v1047
        %v1049 = vpop.f32.mrb[0].mxu0
        %1050 = vmatprep.mubr.f32.mxu0 0.0
        %1051 = vmatmul.mubr.f32.gmra.mrb[0].mxu0 %v951
        %v1052 = vpop.f32.mrb[0].mxu0
        %v1053 = vadd.f32 0.0, %v1052
        %v1054 = vpop.f32.mrb[0].mxu0
        %1055 = vmatprep.mubr.f32.mxu0 0.0
        %1056 = vmatmul.mubr.f32.gmra.mrb[0].mxu0 %v954
        %v1057 = vpop.f32.mrb[0].mxu0
        %v1058 = vadd.f32 0.0, %v1057
        %v1059 = vpop.f32.mrb[0].mxu0
        %1060 = vdwg.mxu0
        %v1061 = vadd.f32 %v913, %v1023
        %v1062 = vadd.f32 %v914, %v1028
        %v1063 = vadd.f32 %v915, %v1033
        %v1064 = vadd.f32 %v916, %v1038
        %v1065 = vadd.f32 %v917, %v1043
        %v1066 = vadd.f32 %v918, %v1048
        %v1067 = vadd.f32 %v919, %v1053
        %v1068 = vadd.f32 %v920, %v1058
        %s1069 = scalar_lea.vmem %s195, 32
        %v1070 = vld [vmem:[%s1069] sm:$0xff]
        %v1071 = vld [vmem:[%s1069 + $0x10] sm:$0xff]
        %v1072 = vld [vmem:[%s1069 + $0x20] sm:$0xff]
        %v1073 = vld [vmem:[%s1069 + $0x30] sm:$0xff]
        %v1074 = vld [vmem:[%s1069 + $0x40] sm:$0xff]
        %v1075 = vld [vmem:[%s1069 + $0x50] sm:$0xff]
        %v1076 = vld [vmem:[%s1069 + $0x60] sm:$0xff]
        %v1077 = vld [vmem:[%s1069 + $0x70] sm:$0xff]
        %s1078 = scalar_lea.vmem %s1, 96
        %v1079 = vld [vmem:[%s1078] sm:$0xff]
        %v1080 = vld [vmem:[%s1078 + $0x8] sm:$0xff]
        %v1082 = vsel %vm217, %v1070, 0
        %v1085 = vsel %vm217, %v1071, 0
        %v1088 = vsel %vm217, %v1072, 0
        %v1091 = vsel %vm217, %v1073, 0
        %v1094 = vsel %vm217, %v1074, 0
        %v1097 = vsel %vm217, %v1075, 0
        %v1100 = vsel %vm217, %v1076, 0
        %v1103 = vsel %vm217, %v1077, 0
        %1105 = vmatprep.subr.mxu0 0.0
        %1106 = vmatpush1.msra.mxu0 %v1079
        %1107 = vmatprep.subr.mxu0 0.0
        %1108 = vmatpush1.msra.mxu0 %v1080
        %1109 = vmatprep.subr.mxu0 0.0
        %1110 = vmatpush1.msra.mxu0 0.0
        %1111 = vmatprep.subr.mxu0 0.0
        %1112 = vmatpush1.msra.mxu0 0.0
        %1113 = vmatprep.subr.mxu0 0.0
        %1114 = vmatpush1.msra.mxu0 0.0
        %1115 = vmatprep.subr.mxu0 0.0
        %1116 = vmatpush1.msra.mxu0 0.0
        %1117 = vmatprep.subr.mxu0 0.0
        %1118 = vmatpush1.msra.mxu0 0.0
        %1119 = vmatprep.subr.mxu0 0.0
        %1120 = vmatpush1.msra.mxu0 0.0
        %1121 = vmatprep.subr.mxu0 0.0
        %1122 = vmatpush1.msra.mxu0 0.0
        %1123 = vmatprep.subr.mxu0 0.0
        %1124 = vmatpush1.msra.mxu0 0.0
        %1125 = vmatprep.subr.mxu0 0.0
        %1126 = vmatpush1.msra.mxu0 0.0
        %1127 = vmatprep.subr.mxu0 0.0
        %1128 = vmatpush1.msra.mxu0 0.0
        %1129 = vmatprep.subr.mxu0 0.0
        %1130 = vmatpush1.msra.mxu0 0.0
        %1131 = vmatprep.subr.mxu0 0.0
        %1132 = vmatpush1.msra.mxu0 0.0
        %1133 = vmatprep.subr.mxu0 0.0
        %1134 = vmatpush1.msra.mxu0 0.0
        %1135 = vmatprep.subr.mxu0 0.0
        %1136 = vmatpush1.msra.mxu0 0.0
        %1137 = vmatprep.subr.mxu0 0.0
        %1138 = vmatpush1.msra.mxu0 0.0
        %1139 = vmatprep.subr.mxu0 0.0
        %1140 = vmatpush1.msra.mxu0 0.0
        %1141 = vmatprep.subr.mxu0 0.0
        %1142 = vmatpush1.msra.mxu0 0.0
        %1143 = vmatprep.subr.mxu0 0.0
        %1144 = vmatpush1.msra.mxu0 0.0
        %1145 = vmatprep.subr.mxu0 0.0
        %1146 = vmatpush1.msra.mxu0 0.0
        %1147 = vmatprep.subr.mxu0 0.0
        %1148 = vmatpush1.msra.mxu0 0.0
        %1149 = vmatprep.subr.mxu0 0.0
        %1150 = vmatpush1.msra.mxu0 0.0
        %1151 = vmatprep.subr.mxu0 0.0
        %1152 = vmatpush1.msra.mxu0 0.0
        %1153 = vmatprep.subr.mxu0 0.0
        %1154 = vmatpush1.msra.mxu0 0.0
        %1155 = vmatprep.subr.mxu0 0.0
        %1156 = vmatpush1.msra.mxu0 0.0
        %1157 = vmatprep.subr.mxu0 0.0
        %1158 = vmatpush1.msra.mxu0 0.0
        %1159 = vmatprep.subr.mxu0 0.0
        %1160 = vmatpush1.msra.mxu0 0.0
        %1161 = vmatprep.subr.mxu0 0.0
        %1162 = vmatpush1.msra.mxu0 0.0
        %1163 = vmatprep.subr.mxu0 0.0
        %1164 = vmatpush1.msra.mxu0 0.0
        %1165 = vmatprep.subr.mxu0 0.0
        %1166 = vmatpush1.msra.mxu0 0.0
        %1167 = vmatprep.subr.mxu0 0.0
        %1168 = vmatpush1.msra.mxu0 0.0
        %1169 = vmatprep.mubr.f32.mxu0 0.0
        %1170 = vmatmul.mubr.f32.gmra.mrb[0].mxu0 %v1082
        %v1171 = vpop.f32.mrb[0].mxu0
        %v1172 = vadd.f32 0.0, %v1171
        %v1173 = vpop.f32.mrb[0].mxu0
        %1174 = vmatprep.mubr.f32.mxu0 0.0
        %1175 = vmatmul.mubr.f32.gmra.mrb[0].mxu0 %v1085
        %v1176 = vpop.f32.mrb[0].mxu0
        %v1177 = vadd.f32 0.0, %v1176
        %v1178 = vpop.f32.mrb[0].mxu0
        %1179 = vmatprep.mubr.f32.mxu0 0.0
        %1180 = vmatmul.mubr.f32.gmra.mrb[0].mxu0 %v1088
        %v1181 = vpop.f32.mrb[0].mxu0
        %v1182 = vadd.f32 0.0, %v1181
        %v1183 = vpop.f32.mrb[0].mxu0
        %1184 = vmatprep.mubr.f32.mxu0 0.0
        %1185 = vmatmul.mubr.f32.gmra.mrb[0].mxu0 %v1091
        %v1186 = vpop.f32.mrb[0].mxu0
        %v1187 = vadd.f32 0.0, %v1186
        %v1188 = vpop.f32.mrb[0].mxu0
        %1189 = vmatprep.mubr.f32.mxu0 0.0
        %1190 = vmatmul.mubr.f32.gmra.mrb[0].mxu0 %v1094
        %v1191 = vpop.f32.mrb[0].mxu0
        %v1192 = vadd.f32 0.0, %v1191
        %v1193 = vpop.f32.mrb[0].mxu0
        %1194 = vmatprep.mubr.f32.mxu0 0.0
        %1195 = vmatmul.mubr.f32.gmra.mrb[0].mxu0 %v1097
        %v1196 = vpop.f32.mrb[0].mxu0
        %v1197 = vadd.f32 0.0, %v1196
        %v1198 = vpop.f32.mrb[0].mxu0
        %1199 = vmatprep.mubr.f32.mxu0 0.0
        %1200 = vmatmul.mubr.f32.gmra.mrb[0].mxu0 %v1100
        %v1201 = vpop.f32.mrb[0].mxu0
        %v1202 = vadd.f32 0.0, %v1201
        %v1203 = vpop.f32.mrb[0].mxu0
        %1204 = vmatprep.mubr.f32.mxu0 0.0
        %1205 = vmatmul.mubr.f32.gmra.mrb[0].mxu0 %v1103
        %v1206 = vpop.f32.mrb[0].mxu0
        %v1207 = vadd.f32 0.0, %v1206
        %v1208 = vpop.f32.mrb[0].mxu0
        %1209 = vdwg.mxu0
        %v1210 = vadd.f32 %v1061, %v1172
        %v1211 = vadd.f32 %v1062, %v1177
        %v1212 = vadd.f32 %v1063, %v1182
        %v1213 = vadd.f32 %v1064, %v1187
        %v1214 = vadd.f32 %v1065, %v1192
        %v1215 = vadd.f32 %v1066, %v1197
        %v1216 = vadd.f32 %v1067, %v1202
        %v1217 = vadd.f32 %v1068, %v1207
        %v1218 = vld [vmem:[%s1069 + $0x1] sm:$0xff]
        %v1219 = vld [vmem:[%s1069 + $0x11] sm:$0xff]
        %v1220 = vld [vmem:[%s1069 + $0x21] sm:$0xff]
        %v1221 = vld [vmem:[%s1069 + $0x31] sm:$0xff]
        %v1222 = vld [vmem:[%s1069 + $0x41] sm:$0xff]
        %v1223 = vld [vmem:[%s1069 + $0x51] sm:$0xff]
        %v1224 = vld [vmem:[%s1069 + $0x61] sm:$0xff]
        %v1225 = vld [vmem:[%s1069 + $0x71] sm:$0xff]
        %s1226 = scalar_lea.vmem %s1, 112
        %v1227 = vld [vmem:[%s1226] sm:$0xff]
        %v1228 = vld [vmem:[%s1226 + $0x8] sm:$0xff]
        %v1230 = vsel %vm217, %v1218, 0
        %v1233 = vsel %vm217, %v1219, 0
        %v1236 = vsel %vm217, %v1220, 0
        %v1239 = vsel %vm217, %v1221, 0
        %v1242 = vsel %vm217, %v1222, 0
        %v1245 = vsel %vm217, %v1223, 0
        %v1248 = vsel %vm217, %v1224, 0
        %v1251 = vsel %vm217, %v1225, 0
        %1253 = vmatprep.subr.mxu0 0.0
        %1254 = vmatpush1.msra.mxu0 %v1227
        %1255 = vmatprep.subr.mxu0 0.0
        %1256 = vmatpush1.msra.mxu0 %v1228
        %1257 = vmatprep.subr.mxu0 0.0
        %1258 = vmatpush1.msra.mxu0 0.0
        %1259 = vmatprep.subr.mxu0 0.0
        %1260 = vmatpush1.msra.mxu0 0.0
        %1261 = vmatprep.subr.mxu0 0.0
        %1262 = vmatpush1.msra.mxu0 0.0
        %1263 = vmatprep.subr.mxu0 0.0
        %1264 = vmatpush1.msra.mxu0 0.0
        %1265 = vmatprep.subr.mxu0 0.0
        %1266 = vmatpush1.msra.mxu0 0.0
        %1267 = vmatprep.subr.mxu0 0.0
        %1268 = vmatpush1.msra.mxu0 0.0
        %1269 = vmatprep.subr.mxu0 0.0
        %1270 = vmatpush1.msra.mxu0 0.0
        %1271 = vmatprep.subr.mxu0 0.0
        %1272 = vmatpush1.msra.mxu0 0.0
        %1273 = vmatprep.subr.mxu0 0.0
        %1274 = vmatpush1.msra.mxu0 0.0
        %1275 = vmatprep.subr.mxu0 0.0
        %1276 = vmatpush1.msra.mxu0 0.0
        %1277 = vmatprep.subr.mxu0 0.0
        %1278 = vmatpush1.msra.mxu0 0.0
        %1279 = vmatprep.subr.mxu0 0.0
        %1280 = vmatpush1.msra.mxu0 0.0
        %1281 = vmatprep.subr.mxu0 0.0
        %1282 = vmatpush1.msra.mxu0 0.0
        %1283 = vmatprep.subr.mxu0 0.0
        %1284 = vmatpush1.msra.mxu0 0.0
        %1285 = vmatprep.subr.mxu0 0.0
        %1286 = vmatpush1.msra.mxu0 0.0
        %1287 = vmatprep.subr.mxu0 0.0
        %1288 = vmatpush1.msra.mxu0 0.0
        %1289 = vmatprep.subr.mxu0 0.0
        %1290 = vmatpush1.msra.mxu0 0.0
        %1291 = vmatprep.subr.mxu0 0.0
        %1292 = vmatpush1.msra.mxu0 0.0
        %1293 = vmatprep.subr.mxu0 0.0
        %1294 = vmatpush1.msra.mxu0 0.0
        %1295 = vmatprep.subr.mxu0 0.0
        %1296 = vmatpush1.msra.mxu0 0.0
        %1297 = vmatprep.subr.mxu0 0.0
        %1298 = vmatpush1.msra.mxu0 0.0
        %1299 = vmatprep.subr.mxu0 0.0
        %1300 = vmatpush1.msra.mxu0 0.0
        %1301 = vmatprep.subr.mxu0 0.0
        %1302 = vmatpush1.msra.mxu0 0.0
        %1303 = vmatprep.subr.mxu0 0.0
        %1304 = vmatpush1.msra.mxu0 0.0
        %1305 = vmatprep.subr.mxu0 0.0
        %1306 = vmatpush1.msra.mxu0 0.0
        %1307 = vmatprep.subr.mxu0 0.0
        %1308 = vmatpush1.msra.mxu0 0.0
        %1309 = vmatprep.subr.mxu0 0.0
        %1310 = vmatpush1.msra.mxu0 0.0
        %1311 = vmatprep.subr.mxu0 0.0
        %1312 = vmatpush1.msra.mxu0 0.0
        %1313 = vmatprep.subr.mxu0 0.0
        %1314 = vmatpush1.msra.mxu0 0.0
        %1315 = vmatprep.subr.mxu0 0.0
        %1316 = vmatpush1.msra.mxu0 0.0
        %1317 = vmatprep.mubr.f32.mxu0 0.0
        %1318 = vmatmul.mubr.f32.gmra.mrb[0].mxu0 %v1230
        %v1319 = vpop.f32.mrb[0].mxu0
        %v1320 = vadd.f32 0.0, %v1319
        %v1321 = vpop.f32.mrb[0].mxu0
        %1322 = vmatprep.mubr.f32.mxu0 0.0
        %1323 = vmatmul.mubr.f32.gmra.mrb[0].mxu0 %v1233
        %v1324 = vpop.f32.mrb[0].mxu0
        %v1325 = vadd.f32 0.0, %v1324
        %v1326 = vpop.f32.mrb[0].mxu0
        %1327 = vmatprep.mubr.f32.mxu0 0.0
        %1328 = vmatmul.mubr.f32.gmra.mrb[0].mxu0 %v1236
        %v1329 = vpop.f32.mrb[0].mxu0
        %v1330 = vadd.f32 0.0, %v1329
        %v1331 = vpop.f32.mrb[0].mxu0
        %1332 = vmatprep.mubr.f32.mxu0 0.0
        %1333 = vmatmul.mubr.f32.gmra.mrb[0].mxu0 %v1239
        %v1334 = vpop.f32.mrb[0].mxu0
        %v1335 = vadd.f32 0.0, %v1334
        %v1336 = vpop.f32.mrb[0].mxu0
        %1337 = vmatprep.mubr.f32.mxu0 0.0
        %1338 = vmatmul.mubr.f32.gmra.mrb[0].mxu0 %v1242
        %v1339 = vpop.f32.mrb[0].mxu0
        %v1340 = vadd.f32 0.0, %v1339
        %v1341 = vpop.f32.mrb[0].mxu0
        %1342 = vmatprep.mubr.f32.mxu0 0.0
        %1343 = vmatmul.mubr.f32.gmra.mrb[0].mxu0 %v1245
        %v1344 = vpop.f32.mrb[0].mxu0
        %v1345 = vadd.f32 0.0, %v1344
        %v1346 = vpop.f32.mrb[0].mxu0
        %1347 = vmatprep.mubr.f32.mxu0 0.0
        %1348 = vmatmul.mubr.f32.gmra.mrb[0].mxu0 %v1248
        %v1349 = vpop.f32.mrb[0].mxu0
        %v1350 = vadd.f32 0.0, %v1349
        %v1351 = vpop.f32.mrb[0].mxu0
        %1352 = vmatprep.mubr.f32.mxu0 0.0
        %1353 = vmatmul.mubr.f32.gmra.mrb[0].mxu0 %v1251
        %v1354 = vpop.f32.mrb[0].mxu0
        %v1355 = vadd.f32 0.0, %v1354
        %v1356 = vpop.f32.mrb[0].mxu0
        %1357 = vdwg.mxu0
        %v1358 = vadd.f32 %v1210, %v1320
        %v1359 = vadd.f32 %v1211, %v1325
        %v1360 = vadd.f32 %v1212, %v1330
        %v1361 = vadd.f32 %v1213, %v1335
        %v1362 = vadd.f32 %v1214, %v1340
        %v1363 = vadd.f32 %v1215, %v1345
        %v1364 = vadd.f32 %v1216, %v1350
        %v1365 = vadd.f32 %v1217, %v1355
        %v1366 = vld [vmem:[%s1069 + $0x2] sm:$0xff]
        %v1367 = vld [vmem:[%s1069 + $0x12] sm:$0xff]
        %v1368 = vld [vmem:[%s1069 + $0x22] sm:$0xff]
        %v1369 = vld [vmem:[%s1069 + $0x32] sm:$0xff]
        %v1370 = vld [vmem:[%s1069 + $0x42] sm:$0xff]
        %v1371 = vld [vmem:[%s1069 + $0x52] sm:$0xff]
        %v1372 = vld [vmem:[%s1069 + $0x62] sm:$0xff]
        %v1373 = vld [vmem:[%s1069 + $0x72] sm:$0xff]
        %s1374 = scalar_lea.vmem %s1, 128
        %v1375 = vld [vmem:[%s1374] sm:$0xff]
        %v1376 = vld [vmem:[%s1374 + $0x8] sm:$0xff]
        %v1378 = vsel %vm217, %v1366, 0
        %v1381 = vsel %vm217, %v1367, 0
        %v1384 = vsel %vm217, %v1368, 0
        %v1387 = vsel %vm217, %v1369, 0
        %v1390 = vsel %vm217, %v1370, 0
        %v1393 = vsel %vm217, %v1371, 0
        %v1396 = vsel %vm217, %v1372, 0
        %v1399 = vsel %vm217, %v1373, 0
        %1401 = vmatprep.subr.mxu0 0.0
        %1402 = vmatpush1.msra.mxu0 %v1375
        %1403 = vmatprep.subr.mxu0 0.0
        %1404 = vmatpush1.msra.mxu0 %v1376
        %1405 = vmatprep.subr.mxu0 0.0
        %1406 = vmatpush1.msra.mxu0 0.0
        %1407 = vmatprep.subr.mxu0 0.0
        %1408 = vmatpush1.msra.mxu0 0.0
        %1409 = vmatprep.subr.mxu0 0.0
        %1410 = vmatpush1.msra.mxu0 0.0
        %1411 = vmatprep.subr.mxu0 0.0
        %1412 = vmatpush1.msra.mxu0 0.0
        %1413 = vmatprep.subr.mxu0 0.0
        %1414 = vmatpush1.msra.mxu0 0.0
        %1415 = vmatprep.subr.mxu0 0.0
        %1416 = vmatpush1.msra.mxu0 0.0
        %1417 = vmatprep.subr.mxu0 0.0
        %1418 = vmatpush1.msra.mxu0 0.0
        %1419 = vmatprep.subr.mxu0 0.0
        %1420 = vmatpush1.msra.mxu0 0.0
        %1421 = vmatprep.subr.mxu0 0.0
        %1422 = vmatpush1.msra.mxu0 0.0
        %1423 = vmatprep.subr.mxu0 0.0
        %1424 = vmatpush1.msra.mxu0 0.0
        %1425 = vmatprep.subr.mxu0 0.0
        %1426 = vmatpush1.msra.mxu0 0.0
        %1427 = vmatprep.subr.mxu0 0.0
        %1428 = vmatpush1.msra.mxu0 0.0
        %1429 = vmatprep.subr.mxu0 0.0
        %1430 = vmatpush1.msra.mxu0 0.0
        %1431 = vmatprep.subr.mxu0 0.0
        %1432 = vmatpush1.msra.mxu0 0.0
        %1433 = vmatprep.subr.mxu0 0.0
        %1434 = vmatpush1.msra.mxu0 0.0
        %1435 = vmatprep.subr.mxu0 0.0
        %1436 = vmatpush1.msra.mxu0 0.0
        %1437 = vmatprep.subr.mxu0 0.0
        %1438 = vmatpush1.msra.mxu0 0.0
        %1439 = vmatprep.subr.mxu0 0.0
        %1440 = vmatpush1.msra.mxu0 0.0
        %1441 = vmatprep.subr.mxu0 0.0
        %1442 = vmatpush1.msra.mxu0 0.0
        %1443 = vmatprep.subr.mxu0 0.0
        %1444 = vmatpush1.msra.mxu0 0.0
        %1445 = vmatprep.subr.mxu0 0.0
        %1446 = vmatpush1.msra.mxu0 0.0
        %1447 = vmatprep.subr.mxu0 0.0
        %1448 = vmatpush1.msra.mxu0 0.0
        %1449 = vmatprep.subr.mxu0 0.0
        %1450 = vmatpush1.msra.mxu0 0.0
        %1451 = vmatprep.subr.mxu0 0.0
        %1452 = vmatpush1.msra.mxu0 0.0
        %1453 = vmatprep.subr.mxu0 0.0
        %1454 = vmatpush1.msra.mxu0 0.0
        %1455 = vmatprep.subr.mxu0 0.0
        %1456 = vmatpush1.msra.mxu0 0.0
        %1457 = vmatprep.subr.mxu0 0.0
        %1458 = vmatpush1.msra.mxu0 0.0
        %1459 = vmatprep.subr.mxu0 0.0
        %1460 = vmatpush1.msra.mxu0 0.0
        %1461 = vmatprep.subr.mxu0 0.0
        %1462 = vmatpush1.msra.mxu0 0.0
        %1463 = vmatprep.subr.mxu0 0.0
        %1464 = vmatpush1.msra.mxu0 0.0
        %1465 = vmatprep.mubr.f32.mxu0 0.0
        %1466 = vmatmul.mubr.f32.gmra.mrb[0].mxu0 %v1378
        %v1467 = vpop.f32.mrb[0].mxu0
        %v1468 = vadd.f32 0.0, %v1467
        %v1469 = vpop.f32.mrb[0].mxu0
        %1470 = vmatprep.mubr.f32.mxu0 0.0
        %1471 = vmatmul.mubr.f32.gmra.mrb[0].mxu0 %v1381
        %v1472 = vpop.f32.mrb[0].mxu0
        %v1473 = vadd.f32 0.0, %v1472
        %v1474 = vpop.f32.mrb[0].mxu0
        %1475 = vmatprep.mubr.f32.mxu0 0.0
        %1476 = vmatmul.mubr.f32.gmra.mrb[0].mxu0 %v1384
        %v1477 = vpop.f32.mrb[0].mxu0
        %v1478 = vadd.f32 0.0, %v1477
        %v1479 = vpop.f32.mrb[0].mxu0
        %1480 = vmatprep.mubr.f32.mxu0 0.0
        %1481 = vmatmul.mubr.f32.gmra.mrb[0].mxu0 %v1387
        %v1482 = vpop.f32.mrb[0].mxu0
        %v1483 = vadd.f32 0.0, %v1482
        %v1484 = vpop.f32.mrb[0].mxu0
        %1485 = vmatprep.mubr.f32.mxu0 0.0
        %1486 = vmatmul.mubr.f32.gmra.mrb[0].mxu0 %v1390
        %v1487 = vpop.f32.mrb[0].mxu0
        %v1488 = vadd.f32 0.0, %v1487
        %v1489 = vpop.f32.mrb[0].mxu0
        %1490 = vmatprep.mubr.f32.mxu0 0.0
        %1491 = vmatmul.mubr.f32.gmra.mrb[0].mxu0 %v1393
        %v1492 = vpop.f32.mrb[0].mxu0
        %v1493 = vadd.f32 0.0, %v1492
        %v1494 = vpop.f32.mrb[0].mxu0
        %1495 = vmatprep.mubr.f32.mxu0 0.0
        %1496 = vmatmul.mubr.f32.gmra.mrb[0].mxu0 %v1396
        %v1497 = vpop.f32.mrb[0].mxu0
        %v1498 = vadd.f32 0.0, %v1497
        %v1499 = vpop.f32.mrb[0].mxu0
        %1500 = vmatprep.mubr.f32.mxu0 0.0
        %1501 = vmatmul.mubr.f32.gmra.mrb[0].mxu0 %v1399
        %v1502 = vpop.f32.mrb[0].mxu0
        %v1503 = vadd.f32 0.0, %v1502
        %v1504 = vpop.f32.mrb[0].mxu0
        %1505 = vdwg.mxu0
        %v1506 = vadd.f32 %v1358, %v1468
        %v1507 = vadd.f32 %v1359, %v1473
        %v1508 = vadd.f32 %v1360, %v1478
        %v1509 = vadd.f32 %v1361, %v1483
        %v1510 = vadd.f32 %v1362, %v1488
        %v1511 = vadd.f32 %v1363, %v1493
        %v1512 = vadd.f32 %v1364, %v1498
        %v1513 = vadd.f32 %v1365, %v1503
        %v1514 = vld [vmem:[%s2] sm:$0x1]
        %v1516 = vlaneseq
        %v1517 = vshrl.u32 %v1516, 7
        %v1518 = vsub.s32 0, %v1517
        %v1519 = vrot.slane %v1514, %v1518
        %v1521 = vmul.f32 %v1506, %v1519
        %v1522 = vmul.f32 %v1507, %v1519
        %v1523 = vmul.f32 %v1508, %v1519
        %v1524 = vmul.f32 %v1509, %v1519
        %v1525 = vmul.f32 %v1510, %v1519
        %v1526 = vmul.f32 %v1511, %v1519
        %v1527 = vmul.f32 %v1512, %v1519
        %v1528 = vmul.f32 %v1513, %v1519
        %v1529 = vld [vmem:[%s3] sm:$0x1]
        %v1531 = vlaneseq
        %v1532 = vshrl.u32 %v1531, 7
        %v1533 = vsub.s32 0, %v1532
        %v1534 = vrot.slane %v1529, %v1533
        %v1536 = vadd.f32 %v1521, %v1534
        %v1537 = vadd.f32 %v1522, %v1534
        %v1538 = vadd.f32 %v1523, %v1534
        %v1539 = vadd.f32 %v1524, %v1534
        %v1540 = vadd.f32 %v1525, %v1534
        %v1541 = vadd.f32 %v1526, %v1534
        %v1542 = vadd.f32 %v1527, %v1534
        %v1543 = vadd.f32 %v1528, %v1534
        %v1544 = vmax.f32 %v1536, 0.0
        %v1545 = vmax.f32 %v1537, 0.0
        %v1546 = vmax.f32 %v1538, 0.0
        %v1547 = vmax.f32 %v1539, 0.0
        %v1548 = vmax.f32 %v1540, 0.0
        %v1549 = vmax.f32 %v1541, 0.0
        %v1550 = vmax.f32 %v1542, 0.0
        %v1551 = vmax.f32 %v1543, 0.0
        %1552 = vst.msk [vmem:[%s190] sm:$0xff] %vm217, %v1544
        %1553 = vst.msk [vmem:[%s190 + $0x8] sm:$0xff] %vm217, %v1545
        %1554 = vst.msk [vmem:[%s190 + $0x10] sm:$0xff] %vm217, %v1546
        %1555 = vst.msk [vmem:[%s190 + $0x18] sm:$0xff] %vm217, %v1547
        %1556 = vst.msk [vmem:[%s190 + $0x20] sm:$0xff] %vm217, %v1548
        %1557 = vst.msk [vmem:[%s190 + $0x28] sm:$0xff] %vm217, %v1549
        %1558 = vst.msk [vmem:[%s190 + $0x30] sm:$0xff] %vm217, %v1550
        %1559 = vst.msk [vmem:[%s190 + $0x38] sm:$0xff] %vm217, %v1551
        %s1560 = sand.u32 %s115, 1
        %s1561 = scalar_lea.sflag [#allocation3], %s1560
        %s1562 = sand.u32 %s115, 1
        %s1563 = smul.addr %s1562, 64
        %s1564 = scalar_lea.vmem [#allocation2], %s1563
        // Predicated region
        $region37: #{tpu_custom_call.1} parent=35 // pred_check
          %p1565 = pneg %p125
        $region38: #{tpu_custom_call.1} parent=35 // pred_check_branch
          %1567 = sbr.rel (%p1565) target = $region40
        $region39: #{tpu_custom_call.1} parent=35 // pred_region
          %s1569 = ssub.s32 1024, 1024
          %1570 = vsyncadd %s1561, %s1569
          %s1571 = smul.addr %s18, 8
          %s1572 = smul.addr %s1571, 128
          %s1573 = scalar_lea.hbm %s4, %s1572
          %s1574 = sshll.u32 %s1564, 4
          %s1575 = int_to_ptr.vmem [resolvable:$true] %s1574
          %1580 = dma.vmem_to_hbm [thread:$0]  %s1575, 1024, %s1573, %s1561, 128, 128, 8
        $region40: #{tpu_custom_call.1} parent=35 // pred_fallthru
          _
      $region36: #{tpu_custom_call.1} parent=5 // pred_fallthru
        _
      %p1581 = scmp.le.s32.totalorder 2, %s13
      // Predicated region
      $region41: #{tpu_custom_call.1} parent=5 // pred_check
        %p1582 = pneg %p1581
      $region42: #{tpu_custom_call.1} parent=5 // pred_check_branch
        %1584 = sbr.rel (%p1582) target = $region44
      $region43: #{tpu_custom_call.1} parent=5 // pred_region
        %s1585 = ssub.s32 %s13, 2
        // Predicated region
        $region45: #{tpu_custom_call.1} parent=43 // pred_check
          %p1586 = pneg %p131
        $region46: #{tpu_custom_call.1} parent=43 // pred_check_branch
          %1588 = sbr.rel (%p1586) target = $region48
        $region47: #{tpu_custom_call.1} parent=43 // pred_region
          %s1589 = sand.u32 %s116, 1
          %s1590 = scalar_lea.sflag [#allocation3], %s1589
          %s1591 = sand.u32 %s116, 1
          %s1592 = smul.addr %s1591, 64
          %s1593 = scalar_lea.vmem [#allocation2], %s1592
          %1594 = dma.done %s1590, 1024
        $region48: #{tpu_custom_call.1} parent=43 // pred_fallthru
          _
      $region44: #{tpu_custom_call.1} parent=5 // pred_fallthru
        _
    $region6: #{tpu_custom_call.1} parent=1 // loop_footer
      %s17 = sadd.s32 1, %s13
    $region7: #{tpu_custom_call.1} parent=1 // loop_footer_branch
      %12 = sbr.rel target = $region3
    $region8: #{tpu_custom_call.1} parent=1 // loop_exit
      _
    %1595 = vsyncpa [#allocation3], 1
    %s1596 = scalar_lea.sflag [#allocation3], 1
    %1597 = vsyncpa %s1596, 1

</llo_original>
